<compile_context>
chip_gen: v7x
topology: tpu7x:2x2x1
jax: 0.10.0
libtpu: 0.0.40
codegen_flags: <defaults>
</compile_context>

<pallas_src>
import jax
import jax.numpy as jnp
from jax.experimental import pallas as pl
from jax.experimental.pallas import tpu as pltpu


# --------------------------------------------------------------------------
# Pallas kernel: ChannelAttention forward for a block of BB batch elements.
# --------------------------------------------------------------------------
def _make_channel_attention_kernel(s_true, s_pad):
    """s_true: real H*W; s_pad: lane-padded spatial extent (multiple of 128)."""

    def kernel(x_ref, w1t_ref, w2t_ref, o_ref):
        f32 = jnp.float32
        x = x_ref[...]                                   # (BB, C, S_pad), native dtype
        xf = x.astype(f32)
        BB, C, _ = xf.shape

        if s_pad != s_true:
            lane = jax.lax.broadcasted_iota(jnp.int32, xf.shape, 2)
            valid = lane < s_true
            x_sum_src = jnp.where(valid, xf, 0.0)
            x_max_src = jnp.where(valid, xf, -jnp.inf)
        else:
            x_sum_src = xf
            x_max_src = xf

        # Global average / max pool over the flattened spatial axis (lane reduce).
        avg = jnp.sum(x_sum_src, axis=-1) * (1.0 / s_true)        # (BB, C)
        mx = jnp.max(x_max_src, axis=-1)                          # (BB, C)

        # Stack all pooled vectors into one operand -> the shared MLP is exactly
        # two wide MXU matmuls for the whole batch block.
        pooled = jnp.concatenate([avg, mx], axis=0)               # (2*BB, C)

        h = jnp.dot(pooled, w1t_ref[...].astype(f32),
                    preferred_element_type=f32,
                    precision=jax.lax.Precision.HIGHEST)          # (2*BB, Cr)
        h = jnp.maximum(h, 0.0)                                   # ReLU
        y = jnp.dot(h, w2t_ref[...].astype(f32),
                    preferred_element_type=f32,
                    precision=jax.lax.Precision.HIGHEST)          # (2*BB, C)

        # avg_out + max_out, per batch element.
        logits = y[:BB] + y[BB:]                                  # (BB, C)

        # Exact, numerically stable sigmoid (no approx reciprocal).
        e = jnp.exp(-jnp.abs(logits))
        gate = jnp.where(logits >= 0.0, 1.0 / (1.0 + e), e / (1.0 + e))

        o_ref[...] = (xf * gate[:, :, None]).astype(o_ref.dtype)

    return kernel


# --------------------------------------------------------------------------
# Wrapper: flatten spatial, batch-block the grid, weights resident in VMEM.
# --------------------------------------------------------------------------
def _pick_block_batch(B, per_batch_bytes, target_bytes=2 << 20):
    """Largest divisor of B giving ~target-sized input blocks; prefer >=2 grid
    steps so both v7x TensorCores get work via the parallel batch axis."""
    cap = max(1, int(target_bytes // max(per_batch_bytes, 1)))
    divisors = [d for d in range(1, B + 1) if B % d == 0]
    two_step = [d for d in divisors if d <= cap and (B // d) >= 2]
    any_fit = [d for d in divisors if d <= cap]
    cands = two_step or any_fit or [1]
    return max(cands)


def channel_attention(x, w1, w2):
    """x: (B, C, H, W); w1: (C//ratio, C) fc1 weight; w2: (C, C//ratio) fc2 weight."""
    B, C, H, W = x.shape
    S = H * W
    Cr = w1.shape[0]

    # Lane-density guard: pad flattened spatial to a multiple of 128.
    S_pad = ((S + 127) // 128) * 128
    x_flat = x.reshape(B, C, S)                     # native dtype, no f32 promotion
    if S_pad != S:
        x_flat = jnp.pad(x_flat, ((0, 0), (0, 0), (0, S_pad - S)))

    # Pre-transpose the tiny 1x1-conv weights once (outside the hot loop) so the
    # kernel does (2BB,C)x(C,Cr) and (2BB,Cr)x(Cr,C) with no in-kernel transpose.
    w1t = jnp.transpose(w1)                         # (C, Cr)
    w2t = jnp.transpose(w2)                         # (Cr, C)

    itemsize = jnp.dtype(x_flat.dtype).itemsize
    BB = _pick_block_batch(B, C * S_pad * itemsize)
    grid = (B // BB,)

    kernel = _make_channel_attention_kernel(S, S_pad)

    out = pl.pallas_call(
        kernel,
        out_shape=jax.ShapeDtypeStruct((B, C, S_pad), x_flat.dtype),
        grid_spec=pltpu.PrefetchScalarGridSpec(
            num_scalar_prefetch=0,
            grid=grid,
            in_specs=[
                pl.BlockSpec((BB, C, S_pad), lambda b: (b, 0, 0)),   # batch block
                pl.BlockSpec((C, Cr), lambda b: (0, 0)),             # fc1^T (invariant)
                pl.BlockSpec((Cr, C), lambda b: (0, 0)),             # fc2^T (invariant)
            ],
            out_specs=pl.BlockSpec((BB, C, S_pad), lambda b: (b, 0, 0)),
        ),
        compiler_params=pltpu.CompilerParams(
            dimension_semantics=("parallel",),
        ),
    )(x_flat, w1t, w2t)

    if S_pad != S:
        out = out[:, :, :S]
    return out.reshape(B, C, H, W)


# --------------------------------------------------------------------------
# Pure-JAX reference mirroring the PyTorch forward (for the self-check).
# --------------------------------------------------------------------------
def reference_forward(x, w1, w2):
    xf = x.astype(jnp.float32)
    avg = jnp.mean(xf, axis=(2, 3))                          # (B, C)
    mx = jnp.max(xf, axis=(2, 3))                            # (B, C)

    def mlp(v):
        h = jnp.maximum(jnp.einsum('rc,bc->br', w1, v), 0.0)
        return jnp.einsum('cr,br->bc', w2, h)

    gate = jax.nn.sigmoid(mlp(avg) + mlp(mx))                # (B, C)
    return (gate[:, :, None, None] * xf).astype(x.dtype)


if __name__ == "__main__":
    B, C, H, W = 4, 64, 16, 16
    ratio = 16                                               # module default
    Cr = C // ratio

    key = jax.random.PRNGKey(0)
    kx, k1, k2 = jax.random.split(key, 3)
    x = jax.random.normal(kx, (B, C, H, W), jnp.float32)
    # Conv2d(in_planes, in_planes//ratio, 1, bias=False) -> weight (Cr, C)
    w1 = jax.random.normal(k1, (Cr, C), jnp.float32) * (1.0 / jnp.sqrt(C))
    # Conv2d(in_planes//ratio, in_planes, 1, bias=False) -> weight (C, Cr)
    w2 = jax.random.normal(k2, (C, Cr), jnp.float32) * (1.0 / jnp.sqrt(Cr))

    out = channel_attention(x, w1, w2)
    out = jax.block_until_ready(out)

    ref = reference_forward(x, w1, w2)
    assert out.shape == (B, C, H, W)
    err = float(jnp.max(jnp.abs(out - ref)))
    assert jnp.allclose(out, ref, atol=2e-3, rtol=2e-3), err

    print("KERNEL_OK")
</pallas_src>

<mosaic_0001>
module attributes {stable_mosaic.version = 11 : i64} {
  func.func @kernel(%arg0: i32, %arg1: memref<2x64x256xf32, #tpu.memory_space<vmem>>, %arg2: memref<64x4xf32, #tpu.memory_space<vmem>>, %arg3: memref<4x64xf32, #tpu.memory_space<vmem>>, %arg4: memref<2x64x256xf32, #tpu.memory_space<vmem>>) attributes {dimension_semantics = [#tpu.dimension_semantics<parallel>], iteration_bounds = array<i64: 2>, scalar_prefetch = 0 : i64, scratch_operands = 0 : i64, tpu.core_type = #tpu.core_type<tc>, window_params = [{transform_indices = @transform_0, window_bounds = array<i64: 2, 64, 256>}, {pipeline_mode = #tpu.pipeline_mode<synchronous>, transform_indices = @transform_1, window_bounds = array<i64: 64, 4>}, {pipeline_mode = #tpu.pipeline_mode<synchronous>, transform_indices = @transform_2, window_bounds = array<i64: 4, 64>}, {transform_indices = @transform_3, window_bounds = array<i64: 2, 64, 256>}]} {
    %c0 = arith.constant 0 : index
    %c0_0 = arith.constant 0 : index
    %c0_1 = arith.constant 0 : index
    %0 = vector.load %arg1[%c0, %c0_0, %c0_1] : memref<2x64x256xf32, #tpu.memory_space<vmem>>, vector<2x64x256xf32>
    %cst = arith.constant dense<0.000000e+00> : vector<2x64xf32>
    %1 = vector.multi_reduction <add>, %0, %cst [2] : vector<2x64x256xf32> to vector<2x64xf32>
    %cst_2 = arith.constant 3.906250e-03 : f32
    %2 = vector.broadcast %cst_2 : f32 to vector<2x64xf32>
    %3 = arith.mulf %1, %2 : vector<2x64xf32>
    %cst_3 = arith.constant dense<0xFF800000> : vector<2x64xf32>
    %4 = vector.multi_reduction <maximumf>, %0, %cst_3 [2] : vector<2x64x256xf32> to vector<2x64xf32>
    %5 = tpu.concatenate %3, %4 in 0 : vector<2x64xf32>, vector<2x64xf32> -> vector<4x64xf32>
    %c0_4 = arith.constant 0 : index
    %c0_5 = arith.constant 0 : index
    %6 = vector.load %arg2[%c0_4, %c0_5] : memref<64x4xf32, #tpu.memory_space<vmem>>, vector<64x4xf32>
    %cst_6 = arith.constant dense<0.000000e+00> : vector<4x4xf32>
    %7 = tpu.matmul %5, %6, %cst_6 {dimension_numbers = #tpu.dot_dimension_numbers<[1], [0], [0], [1], [0, 0, 1, 1], [], []>, precision = #tpu.contract_precision<fp32>} : vector<4x64xf32>, vector<64x4xf32>, vector<4x4xf32> -> vector<4x4xf32>
    %cst_7 = arith.constant 0.000000e+00 : f32
    %8 = vector.broadcast %cst_7 : f32 to vector<4x4xf32>
    %9 = arith.maximumf %7, %8 : vector<4x4xf32>
    %c0_8 = arith.constant 0 : index
    %c0_9 = arith.constant 0 : index
    %10 = vector.load %arg3[%c0_8, %c0_9] : memref<4x64xf32, #tpu.memory_space<vmem>>, vector<4x64xf32>
    %cst_10 = arith.constant dense<0.000000e+00> : vector<4x64xf32>
    %11 = tpu.matmul %9, %10, %cst_10 {dimension_numbers = #tpu.dot_dimension_numbers<[1], [0], [0], [1], [0, 0, 1, 1], [], []>, precision = #tpu.contract_precision<fp32>} : vector<4x4xf32>, vector<4x64xf32>, vector<4x64xf32> -> vector<4x64xf32>
    %12 = vector.extract_strided_slice %11 {offsets = [0, 0], sizes = [2, 64], strides = [1, 1]} : vector<4x64xf32> to vector<2x64xf32>
    %13 = vector.extract_strided_slice %11 {offsets = [2, 0], sizes = [2, 64], strides = [1, 1]} : vector<4x64xf32> to vector<2x64xf32>
    %14 = arith.addf %12, %13 : vector<2x64xf32>
    %15 = math.absf %14 : vector<2x64xf32>
    %cst_11 = arith.constant 0.000000e+00 : f32
    %16 = vector.broadcast %cst_11 : f32 to vector<2x64xf32>
    %17 = arith.subf %16, %15 : vector<2x64xf32>
    %18 = math.exp %17 : vector<2x64xf32>
    %cst_12 = arith.constant 0.000000e+00 : f32
    %19 = vector.broadcast %cst_12 : f32 to vector<2x64xf32>
    %20 = arith.cmpf oge, %14, %19 : vector<2x64xf32>
    %cst_13 = arith.constant 1.000000e+00 : f32
    %21 = vector.broadcast %cst_13 : f32 to vector<2x64xf32>
    %22 = arith.addf %21, %18 : vector<2x64xf32>
    %cst_14 = arith.constant 1.000000e+00 : f32
    %23 = vector.broadcast %cst_14 : f32 to vector<2x64xf32>
    %24 = arith.divf %23, %22 : vector<2x64xf32>
    %cst_15 = arith.constant 1.000000e+00 : f32
    %25 = vector.broadcast %cst_15 : f32 to vector<2x64xf32>
    %26 = arith.addf %25, %18 : vector<2x64xf32>
    %27 = arith.divf %18, %26 : vector<2x64xf32>
    %28 = arith.select %20, %24, %27 : vector<2x64xi1>, vector<2x64xf32>
    %29 = vector.shape_cast %28 : vector<2x64xf32> to vector<2x64x1xf32>
    %30 = vector.broadcast %29 : vector<2x64x1xf32> to vector<2x64x256xf32>
    %31 = arith.mulf %0, %30 : vector<2x64x256xf32>
    %c0_16 = arith.constant 0 : index
    %c0_17 = arith.constant 0 : index
    %c0_18 = arith.constant 0 : index
    %32 = vector.load %arg4[%c0_16, %c0_17, %c0_18] : memref<2x64x256xf32, #tpu.memory_space<vmem>>, vector<2x64x256xf32>
    tpu.vector_store %arg4[%c0_16, %c0_17, %c0_18], %31 {strides = array<i32>} : memref<2x64x256xf32, #tpu.memory_space<vmem>>, vector<2x64x256xf32>,
    return
  }
  func.func @transform_0(%arg0: i32) -> (i32, i32, i32) {
    %c0_i32 = arith.constant 0 : i32
    %c0_i32_0 = arith.constant 0 : i32
    %c0_i32_1 = arith.constant 0 : i32
    return %arg0, %c0_i32, %c0_i32_0 : i32, i32, i32
  }
  func.func @transform_1(%arg0: i32) -> (i32, i32) {
    %c0_i32 = arith.constant 0 : i32
    %c0_i32_0 = arith.constant 0 : i32
    %c0_i32_1 = arith.constant 0 : i32
    return %c0_i32, %c0_i32_0 : i32, i32
  }
  func.func @transform_2(%arg0: i32) -> (i32, i32) {
    %c0_i32 = arith.constant 0 : i32
    %c0_i32_0 = arith.constant 0 : i32
    %c0_i32_1 = arith.constant 0 : i32
    return %c0_i32, %c0_i32_0 : i32, i32
  }
  func.func @transform_3(%arg0: i32) -> (i32, i32, i32) {
    %c0_i32 = arith.constant 0 : i32
    %c0_i32_0 = arith.constant 0 : i32
    %c0_i32_1 = arith.constant 0 : i32
    return %arg0, %c0_i32, %c0_i32_0 : i32, i32, i32
  }
}

</mosaic_0001>

<llo_original>
// kernel: tpu_custom_call.1
$region0: #{tpu_custom_call.1}
  #allocation0 [shape = 'u32[]', space=smem, size = 0x4, offset = 0x4, fixed_abs, tag = 'smem constant byte address 0x4 - core index']
  #allocation1 [shape = 'u32[144,128]{1,0:T(1,128)}', space=vmem, size = 0x12000, scoped, tag = 'internal scratch']
  %s0 = inlined_call_operand.hbm [shape: f32[4,64,256], index: 0, kind: input, shape index: {}]
  %s1 = inlined_call_operand.vmem [shape: f32[64,4], index: 1, kind: input, shape index: {}]
  %s2 = inlined_call_operand.vmem [shape: f32[4,64], index: 2, kind: input, shape index: {}]
  %s3 = inlined_call_operand.hbm [shape: f32[4,64,256], index: 3, kind: output, shape index: {}]
  %s4 = sld [smem:[#allocation0]]
  $region49: #{tpu_custom_call.1} parent=0
    _
  %s6 = ssub.s32 1, %s4
  %s7 = scalar_select 0, %s6, %s4
  $region1: #{tpu_custom_call.1} parent=0
    #allocation2 [shape = 'u8[262144]{0}', space=vmem, size = 0x40000, scoped, tag = 'input window, operand 0']
    #allocation3 [shape = 's32[2]{0}', space=sflag, size = 0x8, scoped, tag = 'scoped memory for tpu_custom_call.1']
    #allocation4 [shape = 's32[2]{0}', space=sflag, size = 0x8, scoped, tag = 'scoped memory for tpu_custom_call.1']
    #allocation5 [shape = 'u8[262144]{0}', space=vmem, size = 0x40000, scoped, tag = 'output window, operand 0']
    %8 = vsyncpa [#allocation3], 0
    %s9 = scalar_lea.sflag [#allocation3], 1
    %10 = vsyncpa %s9, 0
    %11 = vsyncpa [#allocation4], 0
    %s12 = scalar_lea.sflag [#allocation4], 1
    %13 = vsyncpa %s12, 0
    loop: start=0, step=1, limit=4
    $region2: #{tpu_custom_call.1} parent=1 // loop_pre_header
      _
    $region3: #{tpu_custom_call.1} parent=1 // loop_header
      %s15 = sphi 0, %s19
      %p16 = scmp.ge.s32.totalorder %s15, 4
      %s25 = sphi 0, %s27
      %s28 = sphi 0, %s25
      %s29 = sphi 0, %s28
      %s45 = sphi 0, %s29
      %s49 = sphi 0, %s49
      %s51 = sphi 0, %s49
      %s52 = sphi 0, %s51
      %s66 = sphi 0, %s52
      %s70 = sphi 0, %s70
      %s72 = sphi 0, %s70
      %s73 = sphi 0, %s72
      %s87 = sphi 0, %s73
      %s93 = sphi 0, %s95
      %s96 = sphi 0, %s93
      %s97 = sphi 0, %s96
      %s113 = sphi 0, %s97
    $region4: #{tpu_custom_call.1} parent=1 // loop_header_branch
      %18 = sbr.rel (%p16) target = $region8
    $region5: #{tpu_custom_call.1} parent=1 // loop_body
      %s20 = ssub.s32 %s15, 1
      %s21 = ssub.s32 %s15, 2
      %s22 = sadd.s32 %s15, 1
      %s23 = ssub.s32 %s15, %s22
      %p24 = scmp.eq.s32.totalorder %s23, 0
      %s26 = sadd.s32 %s25, 1
      %s27 = scalar_select %p24, %s25, %s26
      %p30 = pneg %p24
      %p31 = scmp.eq.s32.totalorder %s15, 1
      %p32 = por %p30, %p31
      %p33 = scmp.ne.s32.totalorder %s25, %s28
      %p34 = scmp.eq.s32.totalorder %s15, 0
      %p35 = por %p33, %p34
      %p36 = scmp.ne.s32.totalorder %s25, %s28
      %p37 = scmp.eq.s32.totalorder %s20, 1
      %p38 = por %p36, %p37
      %p39 = scmp.ne.s32.totalorder %s28, %s29
      %p40 = scmp.eq.s32.totalorder %s20, 0
      %p41 = por %p39, %p40
      %p42 = scmp.ne.s32.totalorder %s28, %s29
      %p43 = scmp.eq.s32.totalorder %s21, 1
      %p44 = por %p42, %p43
      %p46 = scmp.ne.s32.totalorder %s29, %s45
      %p47 = scmp.eq.s32.totalorder %s21, 0
      %p48 = por %p46, %p47
      %s50 = sadd.s32 %s49, 1
      %p53 = scmp.eq.s32.totalorder %s15, 1
      %p54 = scmp.ne.s32.totalorder %s49, %s51
      %p55 = scmp.eq.s32.totalorder %s15, 0
      %p56 = por %p54, %p55
      %p57 = scmp.ne.s32.totalorder %s49, %s51
      %p58 = scmp.eq.s32.totalorder %s20, 1
      %p59 = por %p57, %p58
      %p60 = scmp.ne.s32.totalorder %s51, %s52
      %p61 = scmp.eq.s32.totalorder %s20, 0
      %p62 = por %p60, %p61
      %p63 = scmp.ne.s32.totalorder %s51, %s52
      %p64 = scmp.eq.s32.totalorder %s21, 1
      %p65 = por %p63, %p64
      %p67 = scmp.ne.s32.totalorder %s52, %s66
      %p68 = scmp.eq.s32.totalorder %s21, 0
      %p69 = por %p67, %p68
      %s71 = sadd.s32 %s70, 1
      %p74 = scmp.eq.s32.totalorder %s15, 1
      %p75 = scmp.ne.s32.totalorder %s70, %s72
      %p76 = scmp.eq.s32.totalorder %s15, 0
      %p77 = por %p75, %p76
      %p78 = scmp.ne.s32.totalorder %s70, %s72
      %p79 = scmp.eq.s32.totalorder %s20, 1
      %p80 = por %p78, %p79
      %p81 = scmp.ne.s32.totalorder %s72, %s73
      %p82 = scmp.eq.s32.totalorder %s20, 0
      %p83 = por %p81, %p82
      %p84 = scmp.ne.s32.totalorder %s72, %s73
      %p85 = scmp.eq.s32.totalorder %s21, 1
      %p86 = por %p84, %p85
      %p88 = scmp.ne.s32.totalorder %s73, %s87
      %p89 = scmp.eq.s32.totalorder %s21, 0
      %p90 = por %p88, %p89
      %s91 = ssub.s32 %s15, %s22
      %p92 = scmp.eq.s32.totalorder %s91, 0
      %s94 = sadd.s32 %s93, 1
      %s95 = scalar_select %p92, %s93, %s94
      %p98 = pneg %p92
      %p99 = scmp.eq.s32.totalorder %s15, 1
      %p100 = por %p98, %p99
      %p101 = scmp.ne.s32.totalorder %s93, %s96
      %p102 = scmp.eq.s32.totalorder %s15, 0
      %p103 = por %p101, %p102
      %p104 = scmp.ne.s32.totalorder %s93, %s96
      %p105 = scmp.eq.s32.totalorder %s20, 1
      %p106 = por %p104, %p105
      %p107 = scmp.ne.s32.totalorder %s96, %s97
      %p108 = scmp.eq.s32.totalorder %s20, 0
      %p109 = por %p107, %p108
      %p110 = scmp.ne.s32.totalorder %s96, %s97
      %p111 = scmp.eq.s32.totalorder %s21, 1
      %p112 = por %p110, %p111
      %p114 = scmp.ne.s32.totalorder %s97, %s113
      %p115 = scmp.eq.s32.totalorder %s21, 0
      %p116 = por %p114, %p115
      %p117 = scmp.le.s32.totalorder 1, %s15
      %p118 = scmp.lt.s32.totalorder %s15, 3
      %p119 = pnand %p117, %p118
      %p120 = pneg %p119
      // Predicated region
      $region9: #{tpu_custom_call.1} parent=5 // pred_check
        _
      $region10: #{tpu_custom_call.1} parent=5 // pred_check_branch
        %122 = sbr.rel (%p119) target = $region12
      $region11: #{tpu_custom_call.1} parent=5 // pred_region
        %s123 = ssub.s32 %s15, 1
        // Predicated region
        $region13: #{tpu_custom_call.1} parent=11 // pred_check
          %p124 = pneg %p62
        $region14: #{tpu_custom_call.1} parent=11 // pred_check_branch
          %126 = sbr.rel (%p124) target = $region16
        $region15: #{tpu_custom_call.1} parent=11 // pred_region
          _
        $region16: #{tpu_custom_call.1} parent=11 // pred_fallthru
          _
        // Predicated region
        $region17: #{tpu_custom_call.1} parent=11 // pred_check
          %p127 = pneg %p83
        $region18: #{tpu_custom_call.1} parent=11 // pred_check_branch
          %129 = sbr.rel (%p127) target = $region20
        $region19: #{tpu_custom_call.1} parent=11 // pred_region
          _
        $region20: #{tpu_custom_call.1} parent=11 // pred_fallthru
          _
      $region12: #{tpu_custom_call.1} parent=5 // pred_fallthru
        _
      %p130 = scmp.lt.s32.totalorder %s15, 2
      // Predicated region
      $region21: #{tpu_custom_call.1} parent=5 // pred_check
        %p131 = pneg %p130
      $region22: #{tpu_custom_call.1} parent=5 // pred_check_branch
        %133 = sbr.rel (%p131) target = $region24
      $region23: #{tpu_custom_call.1} parent=5 // pred_region
        // Predicated region
        $region25: #{tpu_custom_call.1} parent=23 // pred_check
          %p134 = pneg %p35
        $region26: #{tpu_custom_call.1} parent=23 // pred_check_branch
          %136 = sbr.rel (%p134) target = $region28
        $region27: #{tpu_custom_call.1} parent=23 // pred_region
          %s137 = sand.u32 %s25, 1
          %s138 = scalar_lea.sflag [#allocation3], %s137
          %s139 = sand.u32 %s25, 1
          %s140 = smul.addr %s139, 256
          %s141 = scalar_lea.vmem [#allocation2], %s140
          %s142 = smul.u32 2, %s15
          %s144 = ssub.s32 4096, 4096
          %145 = vsyncadd %s138, %s144
          %s146 = smul.addr %s142, 16
          %s147 = smul.addr %s146, 128
          %s148 = scalar_lea.hbm %s0, %s147
          %s149 = sshll.u32 %s141, 4
          %s150 = int_to_ptr.vmem [resolvable:$true] %s149
          %155 = dma.hbm_to_vmem [thread:$0]  %s148, 4096, %s150, %s138, 256, 256, 16
        $region28: #{tpu_custom_call.1} parent=23 // pred_fallthru
          _
      $region24: #{tpu_custom_call.1} parent=5 // pred_fallthru
        _
      %p156 = scmp.le.s32.totalorder 1, %s15
      %p157 = scmp.lt.s32.totalorder %s15, 3
      %p158 = pnand %p156, %p157
      %p159 = pneg %p158
      // Predicated region
      $region29: #{tpu_custom_call.1} parent=5 // pred_check
        _
      $region30: #{tpu_custom_call.1} parent=5 // pred_check_branch
        %161 = sbr.rel (%p158) target = $region32
      $region31: #{tpu_custom_call.1} parent=5 // pred_region
        %s162 = ssub.s32 %s15, 1
        %s163 = sand.u32 %s28, 1
        %s164 = scalar_lea.sflag [#allocation3], %s163
        %s165 = sand.u32 %s28, 1
        %s166 = smul.addr %s165, 256
        %s167 = scalar_lea.vmem [#allocation2], %s166
        // Predicated region
        $region33: #{tpu_custom_call.1} parent=31 // pred_check
          %p168 = pneg %p41
        $region34: #{tpu_custom_call.1} parent=31 // pred_check_branch
          %170 = sbr.rel (%p168) target = $region36
        $region35: #{tpu_custom_call.1} parent=31 // pred_region
          %171 = dma.done %s164, 4096
        $region36: #{tpu_custom_call.1} parent=31 // pred_fallthru
          _
        %s172 = sand.u32 %s28, 1
        %s173 = scalar_lea.sflag [#allocation3], %s172
        %s174 = sand.u32 %s28, 1
        %s175 = smul.addr %s174, 256
        %s176 = scalar_lea.vmem [#allocation2], %s175
        %p177 = pneg %p41
        %p178 = pneg %p38
        %p179 = pneg %p62
        %p180 = pneg %p59
        %p181 = pneg %p83
        %p182 = pneg %p80
        %p183 = pneg %p109
        %p184 = pneg %p106
        %s185 = sand.u32 %s96, 1
        %s186 = scalar_lea.sflag [#allocation4], %s185
        %s187 = sand.u32 %s96, 1
        %s188 = smul.addr %s187, 256
        %s189 = scalar_lea.vmem [#allocation5], %s188
        %s190 = smul.u32 2, %s20
        %s191 = smul.u32 2, %s20
        %v192 = vld [vmem:[%s167] sm:$0xff]
        %v193 = vld [vmem:[%s167 + $0x8] sm:$0xff]
        %v194 = vld [vmem:[%s167 + $0x10] sm:$0xff]
        %v195 = vld [vmem:[%s167 + $0x18] sm:$0xff]
        %v196 = vld [vmem:[%s167 + $0x20] sm:$0xff]
        %v197 = vld [vmem:[%s167 + $0x28] sm:$0xff]
        %v198 = vld [vmem:[%s167 + $0x30] sm:$0xff]
        %v199 = vld [vmem:[%s167 + $0x38] sm:$0xff]
        %v200 = vld [vmem:[%s167 + $0x40] sm:$0xff]
        %v201 = vld [vmem:[%s167 + $0x48] sm:$0xff]
        %v202 = vld [vmem:[%s167 + $0x50] sm:$0xff]
        %v203 = vld [vmem:[%s167 + $0x58] sm:$0xff]
        %v204 = vld [vmem:[%s167 + $0x60] sm:$0xff]
        %v205 = vld [vmem:[%s167 + $0x68] sm:$0xff]
        %v206 = vld [vmem:[%s167 + $0x70] sm:$0xff]
        %v207 = vld [vmem:[%s167 + $0x78] sm:$0xff]
        %v208 = vld [vmem:[%s167 + $0x80] sm:$0xff]
        %v209 = vld [vmem:[%s167 + $0x88] sm:$0xff]
        %v210 = vld [vmem:[%s167 + $0x90] sm:$0xff]
        %v211 = vld [vmem:[%s167 + $0x98] sm:$0xff]
        %v212 = vld [vmem:[%s167 + $0xa0] sm:$0xff]
        %v213 = vld [vmem:[%s167 + $0xa8] sm:$0xff]
        %v214 = vld [vmem:[%s167 + $0xb0] sm:$0xff]
        %v215 = vld [vmem:[%s167 + $0xb8] sm:$0xff]
        %v216 = vld [vmem:[%s167 + $0xc0] sm:$0xff]
        %v217 = vld [vmem:[%s167 + $0xc8] sm:$0xff]
        %v218 = vld [vmem:[%s167 + $0xd0] sm:$0xff]
        %v219 = vld [vmem:[%s167 + $0xd8] sm:$0xff]
        %v220 = vld [vmem:[%s167 + $0xe0] sm:$0xff]
        %v221 = vld [vmem:[%s167 + $0xe8] sm:$0xff]
        %v222 = vld [vmem:[%s167 + $0xf0] sm:$0xff]
        %v223 = vld [vmem:[%s167 + $0xf8] sm:$0xff]
        %v224 = vadd.f32 %v192, %v193
        %225 = vadd.xlane.f32.xlu0 %v224
        %v226 = vpop.xlane.xlu0 %225
        %v227 = vadd.f32 %v194, %v195
        %228 = vadd.xlane.f32.xlu0 %v227
        %v229 = vpop.xlane.xlu0 %228
        %v230 = vadd.f32 %v196, %v197
        %231 = vadd.xlane.f32.xlu0 %v230
        %v232 = vpop.xlane.xlu0 %231
        %v233 = vadd.f32 %v198, %v199
        %234 = vadd.xlane.f32.xlu0 %v233
        %v235 = vpop.xlane.xlu0 %234
        %v236 = vadd.f32 %v200, %v201
        %237 = vadd.xlane.f32.xlu0 %v236
        %v238 = vpop.xlane.xlu0 %237
        %v239 = vadd.f32 %v202, %v203
        %240 = vadd.xlane.f32.xlu0 %v239
        %v241 = vpop.xlane.xlu0 %240
        %v242 = vadd.f32 %v204, %v205
        %243 = vadd.xlane.f32.xlu0 %v242
        %v244 = vpop.xlane.xlu0 %243
        %v245 = vadd.f32 %v206, %v207
        %246 = vadd.xlane.f32.xlu0 %v245
        %v247 = vpop.xlane.xlu0 %246
        %v248 = vadd.f32 %v208, %v209
        %249 = vadd.xlane.f32.xlu0 %v248
        %v250 = vpop.xlane.xlu0 %249
        %v251 = vadd.f32 %v210, %v211
        %252 = vadd.xlane.f32.xlu0 %v251
        %v253 = vpop.xlane.xlu0 %252
        %v254 = vadd.f32 %v212, %v213
        %255 = vadd.xlane.f32.xlu0 %v254
        %v256 = vpop.xlane.xlu0 %255
        %v257 = vadd.f32 %v214, %v215
        %258 = vadd.xlane.f32.xlu0 %v257
        %v259 = vpop.xlane.xlu0 %258
        %v260 = vadd.f32 %v216, %v217
        %261 = vadd.xlane.f32.xlu0 %v260
        %v262 = vpop.xlane.xlu0 %261
        %v263 = vadd.f32 %v218, %v219
        %264 = vadd.xlane.f32.xlu0 %v263
        %v265 = vpop.xlane.xlu0 %264
        %v266 = vadd.f32 %v220, %v221
        %267 = vadd.xlane.f32.xlu0 %v266
        %v268 = vpop.xlane.xlu0 %267
        %v269 = vadd.f32 %v222, %v223
        %270 = vadd.xlane.f32.xlu0 %v269
        %v271 = vpop.xlane.xlu0 %270
        %v272 = vmul.f32 %v226, 0.00390625
        %v273 = vmul.f32 %v229, 0.00390625
        %v274 = vmul.f32 %v232, 0.00390625
        %v275 = vmul.f32 %v235, 0.00390625
        %v276 = vmul.f32 %v238, 0.00390625
        %v277 = vmul.f32 %v241, 0.00390625
        %v278 = vmul.f32 %v244, 0.00390625
        %v279 = vmul.f32 %v247, 0.00390625
        %v280 = vmul.f32 %v250, 0.00390625
        %v281 = vmul.f32 %v253, 0.00390625
        %v282 = vmul.f32 %v256, 0.00390625
        %v283 = vmul.f32 %v259, 0.00390625
        %v284 = vmul.f32 %v262, 0.00390625
        %v285 = vmul.f32 %v265, 0.00390625
        %v286 = vmul.f32 %v268, 0.00390625
        %v287 = vmul.f32 %v271, 0.00390625
        %v288 = vmax.f32 %v192, %v193
        %289 = vmax.xlane.f32.xlu0 %v288
        %v290 = vpop.xlane.xlu0 %289
        %v291 = vmax.f32 %v194, %v195
        %292 = vmax.xlane.f32.xlu0 %v291
        %v293 = vpop.xlane.xlu0 %292
        %v294 = vmax.f32 %v196, %v197
        %295 = vmax.xlane.f32.xlu0 %v294
        %v296 = vpop.xlane.xlu0 %295
        %v297 = vmax.f32 %v198, %v199
        %298 = vmax.xlane.f32.xlu0 %v297
        %v299 = vpop.xlane.xlu0 %298
        %v300 = vmax.f32 %v200, %v201
        %301 = vmax.xlane.f32.xlu0 %v300
        %v302 = vpop.xlane.xlu0 %301
        %v303 = vmax.f32 %v202, %v203
        %304 = vmax.xlane.f32.xlu0 %v303
        %v305 = vpop.xlane.xlu0 %304
        %v306 = vmax.f32 %v204, %v205
        %307 = vmax.xlane.f32.xlu0 %v306
        %v308 = vpop.xlane.xlu0 %307
        %v309 = vmax.f32 %v206, %v207
        %310 = vmax.xlane.f32.xlu0 %v309
        %v311 = vpop.xlane.xlu0 %310
        %v312 = vmax.f32 %v208, %v209
        %313 = vmax.xlane.f32.xlu0 %v312
        %v314 = vpop.xlane.xlu0 %313
        %v315 = vmax.f32 %v210, %v211
        %316 = vmax.xlane.f32.xlu0 %v315
        %v317 = vpop.xlane.xlu0 %316
        %v318 = vmax.f32 %v212, %v213
        %319 = vmax.xlane.f32.xlu0 %v318
        %v320 = vpop.xlane.xlu0 %319
        %v321 = vmax.f32 %v214, %v215
        %322 = vmax.xlane.f32.xlu0 %v321
        %v323 = vpop.xlane.xlu0 %322
        %v324 = vmax.f32 %v216, %v217
        %325 = vmax.xlane.f32.xlu0 %v324
        %v326 = vpop.xlane.xlu0 %325
        %v327 = vmax.f32 %v218, %v219
        %328 = vmax.xlane.f32.xlu0 %v327
        %v329 = vpop.xlane.xlu0 %328
        %v330 = vmax.f32 %v220, %v221
        %331 = vmax.xlane.f32.xlu0 %v330
        %v332 = vpop.xlane.xlu0 %331
        %v333 = vmax.f32 %v222, %v223
        %334 = vmax.xlane.f32.xlu0 %v333
        %v335 = vpop.xlane.xlu0 %334
        %v352 = vlaneseq
        %v353 = vand.u32 %v352, 127
        %v354 = vlaneseq
        %v355 = vshrl.u32 %v354, 7
        %v356 = vsub.s32 %v353, %v355
        %v357 = vrot.slane %v272, %v356
        %v358 = vadd.s32 %v353, 4294967288
        %v359 = vlaneseq
        %v360 = vshrl.u32 %v359, 7
        %v361 = vsub.s32 %v358, %v360
        %v362 = vrot.slane %v273, %v361
        %vm363 = vcmask 130112
        %v364 = vsel %vm363, %v362, %v357
        %v365 = vadd.s32 %v353, 4294967280
        %v366 = vlaneseq
        %v367 = vshrl.u32 %v366, 7
        %v368 = vsub.s32 %v365, %v367
        %v369 = vrot.slane %v274, %v368
        %vm370 = vcmask 195712
        %v371 = vsel %vm370, %v369, %v364
        %v372 = vadd.s32 %v353, 4294967272
        %v373 = vlaneseq
        %v374 = vshrl.u32 %v373, 7
        %v375 = vsub.s32 %v372, %v374
        %v376 = vrot.slane %v275, %v375
        %vm377 = vcmask 261312
        %v378 = vsel %vm377, %v376, %v371
        %v379 = vadd.s32 %v353, 4294967264
        %v380 = vlaneseq
        %v381 = vshrl.u32 %v380, 7
        %v382 = vsub.s32 %v379, %v381
        %v383 = vrot.slane %v276, %v382
        %vm384 = vcmask 326912
        %v385 = vsel %vm384, %v383, %v378
        %v386 = vadd.s32 %v353, 4294967256
        %v387 = vlaneseq
        %v388 = vshrl.u32 %v387, 7
        %v389 = vsub.s32 %v386, %v388
        %v390 = vrot.slane %v277, %v389
        %vm391 = vcmask 392512
        %v392 = vsel %vm391, %v390, %v385
        %v393 = vadd.s32 %v353, 4294967248
        %v394 = vlaneseq
        %v395 = vshrl.u32 %v394, 7
        %v396 = vsub.s32 %v393, %v395
        %v397 = vrot.slane %v278, %v396
        %vm398 = vcmask 458112
        %v399 = vsel %vm398, %v397, %v392
        %v400 = vadd.s32 %v353, 4294967240
        %v401 = vlaneseq
        %v402 = vshrl.u32 %v401, 7
        %v403 = vsub.s32 %v400, %v402
        %v404 = vrot.slane %v279, %v403
        %vm405 = vcmask 523712
        %v406 = vsel %vm405, %v404, %v399
        %v407 = vlaneseq
        %v408 = vshrl.u32 %v407, 7
        %v409 = vsub.s32 %v353, %v408
        %v410 = vrot.slane %v280, %v409
        %v411 = vlaneseq
        %v412 = vshrl.u32 %v411, 7
        %v413 = vsub.s32 %v358, %v412
        %v414 = vrot.slane %v281, %v413
        %v415 = vsel %vm363, %v414, %v410
        %v416 = vlaneseq
        %v417 = vshrl.u32 %v416, 7
        %v418 = vsub.s32 %v365, %v417
        %v419 = vrot.slane %v282, %v418
        %v420 = vsel %vm370, %v419, %v415
        %v421 = vlaneseq
        %v422 = vshrl.u32 %v421, 7
        %v423 = vsub.s32 %v372, %v422
        %v424 = vrot.slane %v283, %v423
        %v425 = vsel %vm377, %v424, %v420
        %v426 = vlaneseq
        %v427 = vshrl.u32 %v426, 7
        %v428 = vsub.s32 %v379, %v427
        %v429 = vrot.slane %v284, %v428
        %v430 = vsel %vm384, %v429, %v425
        %v431 = vlaneseq
        %v432 = vshrl.u32 %v431, 7
        %v433 = vsub.s32 %v386, %v432
        %v434 = vrot.slane %v285, %v433
        %v435 = vsel %vm391, %v434, %v430
        %v436 = vlaneseq
        %v437 = vshrl.u32 %v436, 7
        %v438 = vsub.s32 %v393, %v437
        %v439 = vrot.slane %v286, %v438
        %v440 = vsel %vm398, %v439, %v435
        %v441 = vlaneseq
        %v442 = vshrl.u32 %v441, 7
        %v443 = vsub.s32 %v400, %v442
        %v444 = vrot.slane %v287, %v443
        %v445 = vsel %vm405, %v444, %v440
        %vm446 = vcmask 1041409
        %v447 = vsel %vm446, %v445, %v406
        %v465 = vlaneseq
        %v466 = vshrl.u32 %v465, 7
        %v467 = vsub.s32 %v353, %v466
        %v468 = vrot.slane %v290, %v467
        %v469 = vlaneseq
        %v470 = vshrl.u32 %v469, 7
        %v471 = vsub.s32 %v358, %v470
        %v472 = vrot.slane %v293, %v471
        %v473 = vsel %vm363, %v472, %v468
        %v474 = vlaneseq
        %v475 = vshrl.u32 %v474, 7
        %v476 = vsub.s32 %v365, %v475
        %v477 = vrot.slane %v296, %v476
        %v478 = vsel %vm370, %v477, %v473
        %v479 = vlaneseq
        %v480 = vshrl.u32 %v479, 7
        %v481 = vsub.s32 %v372, %v480
        %v482 = vrot.slane %v299, %v481
        %v483 = vsel %vm377, %v482, %v478
        %v484 = vlaneseq
        %v485 = vshrl.u32 %v484, 7
        %v486 = vsub.s32 %v379, %v485
        %v487 = vrot.slane %v302, %v486
        %v488 = vsel %vm384, %v487, %v483
        %v489 = vlaneseq
        %v490 = vshrl.u32 %v489, 7
        %v491 = vsub.s32 %v386, %v490
        %v492 = vrot.slane %v305, %v491
        %v493 = vsel %vm391, %v492, %v488
        %v494 = vlaneseq
        %v495 = vshrl.u32 %v494, 7
        %v496 = vsub.s32 %v393, %v495
        %v497 = vrot.slane %v308, %v496
        %v498 = vsel %vm398, %v497, %v493
        %v499 = vlaneseq
        %v500 = vshrl.u32 %v499, 7
        %v501 = vsub.s32 %v400, %v500
        %v502 = vrot.slane %v311, %v501
        %v503 = vsel %vm405, %v502, %v498
        %v504 = vlaneseq
        %v505 = vshrl.u32 %v504, 7
        %v506 = vsub.s32 %v353, %v505
        %v507 = vrot.slane %v314, %v506
        %v508 = vlaneseq
        %v509 = vshrl.u32 %v508, 7
        %v510 = vsub.s32 %v358, %v509
        %v511 = vrot.slane %v317, %v510
        %v512 = vsel %vm363, %v511, %v507
        %v513 = vlaneseq
        %v514 = vshrl.u32 %v513, 7
        %v515 = vsub.s32 %v365, %v514
        %v516 = vrot.slane %v320, %v515
        %v517 = vsel %vm370, %v516, %v512
        %v518 = vlaneseq
        %v519 = vshrl.u32 %v518, 7
        %v520 = vsub.s32 %v372, %v519
        %v521 = vrot.slane %v323, %v520
        %v522 = vsel %vm377, %v521, %v517
        %v523 = vlaneseq
        %v524 = vshrl.u32 %v523, 7
        %v525 = vsub.s32 %v379, %v524
        %v526 = vrot.slane %v326, %v525
        %v527 = vsel %vm384, %v526, %v522
        %v528 = vlaneseq
        %v529 = vshrl.u32 %v528, 7
        %v530 = vsub.s32 %v386, %v529
        %v531 = vrot.slane %v329, %v530
        %v532 = vsel %vm391, %v531, %v527
        %v533 = vlaneseq
        %v534 = vshrl.u32 %v533, 7
        %v535 = vsub.s32 %v393, %v534
        %v536 = vrot.slane %v332, %v535
        %v537 = vsel %vm398, %v536, %v532
        %v538 = vlaneseq
        %v539 = vshrl.u32 %v538, 7
        %v540 = vsub.s32 %v400, %v539
        %v541 = vrot.slane %v335, %v540
        %v542 = vsel %vm405, %v541, %v537
        %vm543 = vcmask 1043459
        %v544 = vsel %vm543, %v542, %v503
        %vm546 = vcmask 1041408
        %v547 = vsel %vm546, %v447, %v544
        %v548 = vld [vmem:[%s1] sm:$0xff]
        %v549 = vld [vmem:[%s1 + $0x8] sm:$0xff]
        %v550 = vld [vmem:[%s1 + $0x10] sm:$0xff]
        %v551 = vld [vmem:[%s1 + $0x18] sm:$0xff]
        %v552 = vld [vmem:[%s1 + $0x20] sm:$0xff]
        %v553 = vld [vmem:[%s1 + $0x28] sm:$0xff]
        %v554 = vld [vmem:[%s1 + $0x30] sm:$0xff]
        %v555 = vld [vmem:[%s1 + $0x38] sm:$0xff]
        %vm556 = vcmask 523264
        %v558 = vsel %vm556, %v547, 0
        %560 = vmatprep.subr.mxu0 0.0
        %v561 = vand.u32 %v548, 4294901760
        %562 = vmatpush1.msra.mxu0 %v561
        %563 = vmatprep.subr.mxu0 0.0
        %v564 = vand.u32 %v549, 4294901760
        %565 = vmatpush1.msra.mxu0 %v564
        %566 = vmatprep.subr.mxu0 0.0
        %v567 = vand.u32 %v550, 4294901760
        %568 = vmatpush1.msra.mxu0 %v567
        %569 = vmatprep.subr.mxu0 0.0
        %v570 = vand.u32 %v551, 4294901760
        %571 = vmatpush1.msra.mxu0 %v570
        %572 = vmatprep.subr.mxu0 0.0
        %v573 = vand.u32 %v552, 4294901760
        %574 = vmatpush1.msra.mxu0 %v573
        %575 = vmatprep.subr.mxu0 0.0
        %v576 = vand.u32 %v553, 4294901760
        %577 = vmatpush1.msra.mxu0 %v576
        %578 = vmatprep.subr.mxu0 0.0
        %v579 = vand.u32 %v554, 4294901760
        %580 = vmatpush1.msra.mxu0 %v579
        %581 = vmatprep.subr.mxu0 0.0
        %v582 = vand.u32 %v555, 4294901760
        %583 = vmatpush1.msra.mxu0 %v582
        %584 = vmatprep.subr.mxu0 0.0
        %585 = vmatpush1.msra.mxu0 0.0
        %586 = vmatprep.subr.mxu0 0.0
        %587 = vmatpush1.msra.mxu0 0.0
        %588 = vmatprep.subr.mxu0 0.0
        %589 = vmatpush1.msra.mxu0 0.0
        %590 = vmatprep.subr.mxu0 0.0
        %591 = vmatpush1.msra.mxu0 0.0
        %592 = vmatprep.subr.mxu0 0.0
        %593 = vmatpush1.msra.mxu0 0.0
        %594 = vmatprep.subr.mxu0 0.0
        %595 = vmatpush1.msra.mxu0 0.0
        %596 = vmatprep.subr.mxu0 0.0
        %597 = vmatpush1.msra.mxu0 0.0
        %598 = vmatprep.subr.mxu0 0.0
        %599 = vmatpush1.msra.mxu0 0.0
        %600 = vmatprep.subr.mxu0 0.0
        %601 = vmatpush1.msra.mxu0 0.0
        %602 = vmatprep.subr.mxu0 0.0
        %603 = vmatpush1.msra.mxu0 0.0
        %604 = vmatprep.subr.mxu0 0.0
        %605 = vmatpush1.msra.mxu0 0.0
        %606 = vmatprep.subr.mxu0 0.0
        %607 = vmatpush1.msra.mxu0 0.0
        %608 = vmatprep.subr.mxu0 0.0
        %609 = vmatpush1.msra.mxu0 0.0
        %610 = vmatprep.subr.mxu0 0.0
        %611 = vmatpush1.msra.mxu0 0.0
        %612 = vmatprep.subr.mxu0 0.0
        %613 = vmatpush1.msra.mxu0 0.0
        %614 = vmatprep.subr.mxu0 0.0
        %615 = vmatpush1.msra.mxu0 0.0
        %616 = vmatprep.subr.mxu0 0.0
        %617 = vmatpush1.msra.mxu0 0.0
        %618 = vmatprep.subr.mxu0 0.0
        %619 = vmatpush1.msra.mxu0 0.0
        %620 = vmatprep.subr.mxu0 0.0
        %621 = vmatpush1.msra.mxu0 0.0
        %622 = vmatprep.subr.mxu0 0.0
        %623 = vmatpush1.msra.mxu0 0.0
        %624 = vmatprep.subr.mxu0 0.0
        %625 = vmatpush1.msra.mxu0 0.0
        %626 = vmatprep.subr.mxu0 0.0
        %627 = vmatpush1.msra.mxu0 0.0
        %628 = vmatprep.subr.mxu0 0.0
        %629 = vmatpush1.msra.mxu0 0.0
        %630 = vmatprep.subr.mxu0 0.0
        %631 = vmatpush1.msra.mxu0 0.0
        %632 = vmatprep.mubr.f32.mxu0 0.0
        %v633 = vand.u32 %v558, 4294901760
        %v634 = vsub.f32 %v558, %v633
        %v635 = vand.u32 %v634, 4294901760
        %v636 = vsub.f32 %v634, %v635
        %v637 = vand.u32 %v636, 4294901760
        %638 = vmatmul.mubr.f32.gmra.mrb[0].mxu0 %v637
        %v639 = vpop.f32.mrb[0].mxu0
        %v640 = vadd.f32 0.0, %v639
        %v641 = vpop.f32.mrb[0].mxu0
        %642 = vdwg.mxu0
        %643 = vmatprep.subr.mxu0 0.0
        %v644 = vand.u32 %v548, 4294901760
        %v645 = vsub.f32 %v548, %v644
        %v646 = vand.u32 %v645, 4294901760
        %v647 = vsub.f32 %v645, %v646
        %v648 = vand.u32 %v647, 4294901760
        %649 = vmatpush1.msra.mxu0 %v648
        %650 = vmatprep.subr.mxu0 0.0
        %v651 = vand.u32 %v549, 4294901760
        %v652 = vsub.f32 %v549, %v651
        %v653 = vand.u32 %v652, 4294901760
        %v654 = vsub.f32 %v652, %v653
        %v655 = vand.u32 %v654, 4294901760
        %656 = vmatpush1.msra.mxu0 %v655
        %657 = vmatprep.subr.mxu0 0.0
        %v658 = vand.u32 %v550, 4294901760
        %v659 = vsub.f32 %v550, %v658
        %v660 = vand.u32 %v659, 4294901760
        %v661 = vsub.f32 %v659, %v660
        %v662 = vand.u32 %v661, 4294901760
        %663 = vmatpush1.msra.mxu0 %v662
        %664 = vmatprep.subr.mxu0 0.0
        %v665 = vand.u32 %v551, 4294901760
        %v666 = vsub.f32 %v551, %v665
        %v667 = vand.u32 %v666, 4294901760
        %v668 = vsub.f32 %v666, %v667
        %v669 = vand.u32 %v668, 4294901760
        %670 = vmatpush1.msra.mxu0 %v669
        %671 = vmatprep.subr.mxu0 0.0
        %v672 = vand.u32 %v552, 4294901760
        %v673 = vsub.f32 %v552, %v672
        %v674 = vand.u32 %v673, 4294901760
        %v675 = vsub.f32 %v673, %v674
        %v676 = vand.u32 %v675, 4294901760
        %677 = vmatpush1.msra.mxu0 %v676
        %678 = vmatprep.subr.mxu0 0.0
        %v679 = vand.u32 %v553, 4294901760
        %v680 = vsub.f32 %v553, %v679
        %v681 = vand.u32 %v680, 4294901760
        %v682 = vsub.f32 %v680, %v681
        %v683 = vand.u32 %v682, 4294901760
        %684 = vmatpush1.msra.mxu0 %v683
        %685 = vmatprep.subr.mxu0 0.0
        %v686 = vand.u32 %v554, 4294901760
        %v687 = vsub.f32 %v554, %v686
        %v688 = vand.u32 %v687, 4294901760
        %v689 = vsub.f32 %v687, %v688
        %v690 = vand.u32 %v689, 4294901760
        %691 = vmatpush1.msra.mxu0 %v690
        %692 = vmatprep.subr.mxu0 0.0
        %v693 = vand.u32 %v555, 4294901760
        %v694 = vsub.f32 %v555, %v693
        %v695 = vand.u32 %v694, 4294901760
        %v696 = vsub.f32 %v694, %v695
        %v697 = vand.u32 %v696, 4294901760
        %698 = vmatpush1.msra.mxu0 %v697
        %699 = vmatprep.subr.mxu0 0.0
        %700 = vmatpush1.msra.mxu0 0.0
        %701 = vmatprep.subr.mxu0 0.0
        %702 = vmatpush1.msra.mxu0 0.0
        %703 = vmatprep.subr.mxu0 0.0
        %704 = vmatpush1.msra.mxu0 0.0
        %705 = vmatprep.subr.mxu0 0.0
        %706 = vmatpush1.msra.mxu0 0.0
        %707 = vmatprep.subr.mxu0 0.0
        %708 = vmatpush1.msra.mxu0 0.0
        %709 = vmatprep.subr.mxu0 0.0
        %710 = vmatpush1.msra.mxu0 0.0
        %711 = vmatprep.subr.mxu0 0.0
        %712 = vmatpush1.msra.mxu0 0.0
        %713 = vmatprep.subr.mxu0 0.0
        %714 = vmatpush1.msra.mxu0 0.0
        %715 = vmatprep.subr.mxu0 0.0
        %716 = vmatpush1.msra.mxu0 0.0
        %717 = vmatprep.subr.mxu0 0.0
        %718 = vmatpush1.msra.mxu0 0.0
        %719 = vmatprep.subr.mxu0 0.0
        %720 = vmatpush1.msra.mxu0 0.0
        %721 = vmatprep.subr.mxu0 0.0
        %722 = vmatpush1.msra.mxu0 0.0
        %723 = vmatprep.subr.mxu0 0.0
        %724 = vmatpush1.msra.mxu0 0.0
        %725 = vmatprep.subr.mxu0 0.0
        %726 = vmatpush1.msra.mxu0 0.0
        %727 = vmatprep.subr.mxu0 0.0
        %728 = vmatpush1.msra.mxu0 0.0
        %729 = vmatprep.subr.mxu0 0.0
        %730 = vmatpush1.msra.mxu0 0.0
        %731 = vmatprep.subr.mxu0 0.0
        %732 = vmatpush1.msra.mxu0 0.0
        %733 = vmatprep.subr.mxu0 0.0
        %734 = vmatpush1.msra.mxu0 0.0
        %735 = vmatprep.subr.mxu0 0.0
        %736 = vmatpush1.msra.mxu0 0.0
        %737 = vmatprep.subr.mxu0 0.0
        %738 = vmatpush1.msra.mxu0 0.0
        %739 = vmatprep.subr.mxu0 0.0
        %740 = vmatpush1.msra.mxu0 0.0
        %741 = vmatprep.subr.mxu0 0.0
        %742 = vmatpush1.msra.mxu0 0.0
        %743 = vmatprep.subr.mxu0 0.0
        %744 = vmatpush1.msra.mxu0 0.0
        %745 = vmatprep.subr.mxu0 0.0
        %746 = vmatpush1.msra.mxu0 0.0
        %747 = vmatprep.mubr.f32.mxu0 0.0
        %v748 = vand.u32 %v558, 4294901760
        %749 = vmatmul.mubr.f32.gmra.mrb[0].mxu0 %v748
        %v750 = vpop.f32.mrb[0].mxu0
        %v751 = vadd.f32 %v640, %v750
        %v752 = vpop.f32.mrb[0].mxu0
        %753 = vdwg.mxu0
        %754 = vmatprep.subr.mxu0 0.0
        %v755 = vand.u32 %v548, 4294901760
        %v756 = vsub.f32 %v548, %v755
        %757 = vmatpush1.msra.mxu0 %v756
        %758 = vmatprep.subr.mxu0 0.0
        %v759 = vand.u32 %v549, 4294901760
        %v760 = vsub.f32 %v549, %v759
        %761 = vmatpush1.msra.mxu0 %v760
        %762 = vmatprep.subr.mxu0 0.0
        %v763 = vand.u32 %v550, 4294901760
        %v764 = vsub.f32 %v550, %v763
        %765 = vmatpush1.msra.mxu0 %v764
        %766 = vmatprep.subr.mxu0 0.0
        %v767 = vand.u32 %v551, 4294901760
        %v768 = vsub.f32 %v551, %v767
        %769 = vmatpush1.msra.mxu0 %v768
        %770 = vmatprep.subr.mxu0 0.0
        %v771 = vand.u32 %v552, 4294901760
        %v772 = vsub.f32 %v552, %v771
        %773 = vmatpush1.msra.mxu0 %v772
        %774 = vmatprep.subr.mxu0 0.0
        %v775 = vand.u32 %v553, 4294901760
        %v776 = vsub.f32 %v553, %v775
        %777 = vmatpush1.msra.mxu0 %v776
        %778 = vmatprep.subr.mxu0 0.0
        %v779 = vand.u32 %v554, 4294901760
        %v780 = vsub.f32 %v554, %v779
        %781 = vmatpush1.msra.mxu0 %v780
        %782 = vmatprep.subr.mxu0 0.0
        %v783 = vand.u32 %v555, 4294901760
        %v784 = vsub.f32 %v555, %v783
        %785 = vmatpush1.msra.mxu0 %v784
        %786 = vmatprep.subr.mxu0 0.0
        %787 = vmatpush1.msra.mxu0 0.0
        %788 = vmatprep.subr.mxu0 0.0
        %789 = vmatpush1.msra.mxu0 0.0
        %790 = vmatprep.subr.mxu0 0.0
        %791 = vmatpush1.msra.mxu0 0.0
        %792 = vmatprep.subr.mxu0 0.0
        %793 = vmatpush1.msra.mxu0 0.0
        %794 = vmatprep.subr.mxu0 0.0
        %795 = vmatpush1.msra.mxu0 0.0
        %796 = vmatprep.subr.mxu0 0.0
        %797 = vmatpush1.msra.mxu0 0.0
        %798 = vmatprep.subr.mxu0 0.0
        %799 = vmatpush1.msra.mxu0 0.0
        %800 = vmatprep.subr.mxu0 0.0
        %801 = vmatpush1.msra.mxu0 0.0
        %802 = vmatprep.subr.mxu0 0.0
        %803 = vmatpush1.msra.mxu0 0.0
        %804 = vmatprep.subr.mxu0 0.0
        %805 = vmatpush1.msra.mxu0 0.0
        %806 = vmatprep.subr.mxu0 0.0
        %807 = vmatpush1.msra.mxu0 0.0
        %808 = vmatprep.subr.mxu0 0.0
        %809 = vmatpush1.msra.mxu0 0.0
        %810 = vmatprep.subr.mxu0 0.0
        %811 = vmatpush1.msra.mxu0 0.0
        %812 = vmatprep.subr.mxu0 0.0
        %813 = vmatpush1.msra.mxu0 0.0
        %814 = vmatprep.subr.mxu0 0.0
        %815 = vmatpush1.msra.mxu0 0.0
        %816 = vmatprep.subr.mxu0 0.0
        %817 = vmatpush1.msra.mxu0 0.0
        %818 = vmatprep.subr.mxu0 0.0
        %819 = vmatpush1.msra.mxu0 0.0
        %820 = vmatprep.subr.mxu0 0.0
        %821 = vmatpush1.msra.mxu0 0.0
        %822 = vmatprep.subr.mxu0 0.0
        %823 = vmatpush1.msra.mxu0 0.0
        %824 = vmatprep.subr.mxu0 0.0
        %825 = vmatpush1.msra.mxu0 0.0
        %826 = vmatprep.subr.mxu0 0.0
        %827 = vmatpush1.msra.mxu0 0.0
        %828 = vmatprep.subr.mxu0 0.0
        %829 = vmatpush1.msra.mxu0 0.0
        %830 = vmatprep.subr.mxu0 0.0
        %831 = vmatpush1.msra.mxu0 0.0
        %832 = vmatprep.subr.mxu0 0.0
        %833 = vmatpush1.msra.mxu0 0.0
        %834 = vmatprep.mubr.f32.mxu0 0.0
        %v835 = vand.u32 %v558, 4294901760
        %v836 = vsub.f32 %v558, %v835
        %837 = vmatmul.mubr.f32.gmra.mrb[0].mxu0 %v836
        %v838 = vpop.f32.mrb[0].mxu0
        %v839 = vadd.f32 %v751, %v838
        %v840 = vpop.f32.mrb[0].mxu0
        %841 = vdwg.mxu0
        %842 = vmatprep.subr.mxu0 0.0
        %v843 = vand.u32 %v548, 4294901760
        %844 = vmatpush1.msra.mxu0 %v843
        %845 = vmatprep.subr.mxu0 0.0
        %v846 = vand.u32 %v549, 4294901760
        %847 = vmatpush1.msra.mxu0 %v846
        %848 = vmatprep.subr.mxu0 0.0
        %v849 = vand.u32 %v550, 4294901760
        %850 = vmatpush1.msra.mxu0 %v849
        %851 = vmatprep.subr.mxu0 0.0
        %v852 = vand.u32 %v551, 4294901760
        %853 = vmatpush1.msra.mxu0 %v852
        %854 = vmatprep.subr.mxu0 0.0
        %v855 = vand.u32 %v552, 4294901760
        %856 = vmatpush1.msra.mxu0 %v855
        %857 = vmatprep.subr.mxu0 0.0
        %v858 = vand.u32 %v553, 4294901760
        %859 = vmatpush1.msra.mxu0 %v858
        %860 = vmatprep.subr.mxu0 0.0
        %v861 = vand.u32 %v554, 4294901760
        %862 = vmatpush1.msra.mxu0 %v861
        %863 = vmatprep.subr.mxu0 0.0
        %v864 = vand.u32 %v555, 4294901760
        %865 = vmatpush1.msra.mxu0 %v864
        %866 = vmatprep.subr.mxu0 0.0
        %867 = vmatpush1.msra.mxu0 0.0
        %868 = vmatprep.subr.mxu0 0.0
        %869 = vmatpush1.msra.mxu0 0.0
        %870 = vmatprep.subr.mxu0 0.0
        %871 = vmatpush1.msra.mxu0 0.0
        %872 = vmatprep.subr.mxu0 0.0
        %873 = vmatpush1.msra.mxu0 0.0
        %874 = vmatprep.subr.mxu0 0.0
        %875 = vmatpush1.msra.mxu0 0.0
        %876 = vmatprep.subr.mxu0 0.0
        %877 = vmatpush1.msra.mxu0 0.0
        %878 = vmatprep.subr.mxu0 0.0
        %879 = vmatpush1.msra.mxu0 0.0
        %880 = vmatprep.subr.mxu0 0.0
        %881 = vmatpush1.msra.mxu0 0.0
        %882 = vmatprep.subr.mxu0 0.0
        %883 = vmatpush1.msra.mxu0 0.0
        %884 = vmatprep.subr.mxu0 0.0
        %885 = vmatpush1.msra.mxu0 0.0
        %886 = vmatprep.subr.mxu0 0.0
        %887 = vmatpush1.msra.mxu0 0.0
        %888 = vmatprep.subr.mxu0 0.0
        %889 = vmatpush1.msra.mxu0 0.0
        %890 = vmatprep.subr.mxu0 0.0
        %891 = vmatpush1.msra.mxu0 0.0
        %892 = vmatprep.subr.mxu0 0.0
        %893 = vmatpush1.msra.mxu0 0.0
        %894 = vmatprep.subr.mxu0 0.0
        %895 = vmatpush1.msra.mxu0 0.0
        %896 = vmatprep.subr.mxu0 0.0
        %897 = vmatpush1.msra.mxu0 0.0
        %898 = vmatprep.subr.mxu0 0.0
        %899 = vmatpush1.msra.mxu0 0.0
        %900 = vmatprep.subr.mxu0 0.0
        %901 = vmatpush1.msra.mxu0 0.0
        %902 = vmatprep.subr.mxu0 0.0
        %903 = vmatpush1.msra.mxu0 0.0
        %904 = vmatprep.subr.mxu0 0.0
        %905 = vmatpush1.msra.mxu0 0.0
        %906 = vmatprep.subr.mxu0 0.0
        %907 = vmatpush1.msra.mxu0 0.0
        %908 = vmatprep.subr.mxu0 0.0
        %909 = vmatpush1.msra.mxu0 0.0
        %910 = vmatprep.subr.mxu0 0.0
        %911 = vmatpush1.msra.mxu0 0.0
        %912 = vmatprep.subr.mxu0 0.0
        %913 = vmatpush1.msra.mxu0 0.0
        %914 = vmatprep.mubr.f32.mxu0 0.0
        %v915 = vand.u32 %v558, 4294901760
        %v916 = vsub.f32 %v558, %v915
        %v917 = vand.u32 %v916, 4294901760
        %918 = vmatmul.mubr.f32.gmra.mrb[0].mxu0 %v917
        %v919 = vpop.f32.mrb[0].mxu0
        %v920 = vadd.f32 %v839, %v919
        %v921 = vpop.f32.mrb[0].mxu0
        %922 = vdwg.mxu0
        %923 = vmatprep.subr.mxu0 0.0
        %v924 = vand.u32 %v548, 4294901760
        %v925 = vsub.f32 %v548, %v924
        %v926 = vand.u32 %v925, 4294901760
        %927 = vmatpush1.msra.mxu0 %v926
        %928 = vmatprep.subr.mxu0 0.0
        %v929 = vand.u32 %v549, 4294901760
        %v930 = vsub.f32 %v549, %v929
        %v931 = vand.u32 %v930, 4294901760
        %932 = vmatpush1.msra.mxu0 %v931
        %933 = vmatprep.subr.mxu0 0.0
        %v934 = vand.u32 %v550, 4294901760
        %v935 = vsub.f32 %v550, %v934
        %v936 = vand.u32 %v935, 4294901760
        %937 = vmatpush1.msra.mxu0 %v936
        %938 = vmatprep.subr.mxu0 0.0
        %v939 = vand.u32 %v551, 4294901760
        %v940 = vsub.f32 %v551, %v939
        %v941 = vand.u32 %v940, 4294901760
        %942 = vmatpush1.msra.mxu0 %v941
        %943 = vmatprep.subr.mxu0 0.0
        %v944 = vand.u32 %v552, 4294901760
        %v945 = vsub.f32 %v552, %v944
        %v946 = vand.u32 %v945, 4294901760
        %947 = vmatpush1.msra.mxu0 %v946
        %948 = vmatprep.subr.mxu0 0.0
        %v949 = vand.u32 %v553, 4294901760
        %v950 = vsub.f32 %v553, %v949
        %v951 = vand.u32 %v950, 4294901760
        %952 = vmatpush1.msra.mxu0 %v951
        %953 = vmatprep.subr.mxu0 0.0
        %v954 = vand.u32 %v554, 4294901760
        %v955 = vsub.f32 %v554, %v954
        %v956 = vand.u32 %v955, 4294901760
        %957 = vmatpush1.msra.mxu0 %v956
        %958 = vmatprep.subr.mxu0 0.0
        %v959 = vand.u32 %v555, 4294901760
        %v960 = vsub.f32 %v555, %v959
        %v961 = vand.u32 %v960, 4294901760
        %962 = vmatpush1.msra.mxu0 %v961
        %963 = vmatprep.subr.mxu0 0.0
        %964 = vmatpush1.msra.mxu0 0.0
        %965 = vmatprep.subr.mxu0 0.0
        %966 = vmatpush1.msra.mxu0 0.0
        %967 = vmatprep.subr.mxu0 0.0
        %968 = vmatpush1.msra.mxu0 0.0
        %969 = vmatprep.subr.mxu0 0.0
        %970 = vmatpush1.msra.mxu0 0.0
        %971 = vmatprep.subr.mxu0 0.0
        %972 = vmatpush1.msra.mxu0 0.0
        %973 = vmatprep.subr.mxu0 0.0
        %974 = vmatpush1.msra.mxu0 0.0
        %975 = vmatprep.subr.mxu0 0.0
        %976 = vmatpush1.msra.mxu0 0.0
        %977 = vmatprep.subr.mxu0 0.0
        %978 = vmatpush1.msra.mxu0 0.0
        %979 = vmatprep.subr.mxu0 0.0
        %980 = vmatpush1.msra.mxu0 0.0
        %981 = vmatprep.subr.mxu0 0.0
        %982 = vmatpush1.msra.mxu0 0.0
        %983 = vmatprep.subr.mxu0 0.0
        %984 = vmatpush1.msra.mxu0 0.0
        %985 = vmatprep.subr.mxu0 0.0
        %986 = vmatpush1.msra.mxu0 0.0
        %987 = vmatprep.subr.mxu0 0.0
        %988 = vmatpush1.msra.mxu0 0.0
        %989 = vmatprep.subr.mxu0 0.0
        %990 = vmatpush1.msra.mxu0 0.0
        %991 = vmatprep.subr.mxu0 0.0
        %992 = vmatpush1.msra.mxu0 0.0
        %993 = vmatprep.subr.mxu0 0.0
        %994 = vmatpush1.msra.mxu0 0.0
        %995 = vmatprep.subr.mxu0 0.0
        %996 = vmatpush1.msra.mxu0 0.0
        %997 = vmatprep.subr.mxu0 0.0
        %998 = vmatpush1.msra.mxu0 0.0
        %999 = vmatprep.subr.mxu0 0.0
        %1000 = vmatpush1.msra.mxu0 0.0
        %1001 = vmatprep.subr.mxu0 0.0
        %1002 = vmatpush1.msra.mxu0 0.0
        %1003 = vmatprep.subr.mxu0 0.0
        %1004 = vmatpush1.msra.mxu0 0.0
        %1005 = vmatprep.subr.mxu0 0.0
        %1006 = vmatpush1.msra.mxu0 0.0
        %1007 = vmatprep.subr.mxu0 0.0
        %1008 = vmatpush1.msra.mxu0 0.0
        %1009 = vmatprep.subr.mxu0 0.0
        %1010 = vmatpush1.msra.mxu0 0.0
        %1011 = vmatprep.mubr.f32.mxu0 0.0
        %v1012 = vand.u32 %v558, 4294901760
        %1013 = vmatmul.mubr.f32.gmra.mrb[0].mxu0 %v1012
        %v1014 = vpop.f32.mrb[0].mxu0
        %v1015 = vadd.f32 %v920, %v1014
        %v1016 = vpop.f32.mrb[0].mxu0
        %1017 = vdwg.mxu0
        %1018 = vmatprep.subr.mxu0 0.0
        %v1019 = vand.u32 %v548, 4294901760
        %1020 = vmatpush1.msra.mxu0 %v1019
        %1021 = vmatprep.subr.mxu0 0.0
        %v1022 = vand.u32 %v549, 4294901760
        %1023 = vmatpush1.msra.mxu0 %v1022
        %1024 = vmatprep.subr.mxu0 0.0
        %v1025 = vand.u32 %v550, 4294901760
        %1026 = vmatpush1.msra.mxu0 %v1025
        %1027 = vmatprep.subr.mxu0 0.0
        %v1028 = vand.u32 %v551, 4294901760
        %1029 = vmatpush1.msra.mxu0 %v1028
        %1030 = vmatprep.subr.mxu0 0.0
        %v1031 = vand.u32 %v552, 4294901760
        %1032 = vmatpush1.msra.mxu0 %v1031
        %1033 = vmatprep.subr.mxu0 0.0
        %v1034 = vand.u32 %v553, 4294901760
        %1035 = vmatpush1.msra.mxu0 %v1034
        %1036 = vmatprep.subr.mxu0 0.0
        %v1037 = vand.u32 %v554, 4294901760
        %1038 = vmatpush1.msra.mxu0 %v1037
        %1039 = vmatprep.subr.mxu0 0.0
        %v1040 = vand.u32 %v555, 4294901760
        %1041 = vmatpush1.msra.mxu0 %v1040
        %1042 = vmatprep.subr.mxu0 0.0
        %1043 = vmatpush1.msra.mxu0 0.0
        %1044 = vmatprep.subr.mxu0 0.0
        %1045 = vmatpush1.msra.mxu0 0.0
        %1046 = vmatprep.subr.mxu0 0.0
        %1047 = vmatpush1.msra.mxu0 0.0
        %1048 = vmatprep.subr.mxu0 0.0
        %1049 = vmatpush1.msra.mxu0 0.0
        %1050 = vmatprep.subr.mxu0 0.0
        %1051 = vmatpush1.msra.mxu0 0.0
        %1052 = vmatprep.subr.mxu0 0.0
        %1053 = vmatpush1.msra.mxu0 0.0
        %1054 = vmatprep.subr.mxu0 0.0
        %1055 = vmatpush1.msra.mxu0 0.0
        %1056 = vmatprep.subr.mxu0 0.0
        %1057 = vmatpush1.msra.mxu0 0.0
        %1058 = vmatprep.subr.mxu0 0.0
        %1059 = vmatpush1.msra.mxu0 0.0
        %1060 = vmatprep.subr.mxu0 0.0
        %1061 = vmatpush1.msra.mxu0 0.0
        %1062 = vmatprep.subr.mxu0 0.0
        %1063 = vmatpush1.msra.mxu0 0.0
        %1064 = vmatprep.subr.mxu0 0.0
        %1065 = vmatpush1.msra.mxu0 0.0
        %1066 = vmatprep.subr.mxu0 0.0
        %1067 = vmatpush1.msra.mxu0 0.0
        %1068 = vmatprep.subr.mxu0 0.0
        %1069 = vmatpush1.msra.mxu0 0.0
        %1070 = vmatprep.subr.mxu0 0.0
        %1071 = vmatpush1.msra.mxu0 0.0
        %1072 = vmatprep.subr.mxu0 0.0
        %1073 = vmatpush1.msra.mxu0 0.0
        %1074 = vmatprep.subr.mxu0 0.0
        %1075 = vmatpush1.msra.mxu0 0.0
        %1076 = vmatprep.subr.mxu0 0.0
        %1077 = vmatpush1.msra.mxu0 0.0
        %1078 = vmatprep.subr.mxu0 0.0
        %1079 = vmatpush1.msra.mxu0 0.0
        %1080 = vmatprep.subr.mxu0 0.0
        %1081 = vmatpush1.msra.mxu0 0.0
        %1082 = vmatprep.subr.mxu0 0.0
        %1083 = vmatpush1.msra.mxu0 0.0
        %1084 = vmatprep.subr.mxu0 0.0
        %1085 = vmatpush1.msra.mxu0 0.0
        %1086 = vmatprep.subr.mxu0 0.0
        %1087 = vmatpush1.msra.mxu0 0.0
        %1088 = vmatprep.subr.mxu0 0.0
        %1089 = vmatpush1.msra.mxu0 0.0
        %1090 = vmatprep.mubr.f32.mxu0 0.0
        %v1091 = vand.u32 %v558, 4294901760
        %1092 = vmatmul.mubr.f32.gmra.mrb[0].mxu0 %v1091
        %v1093 = vpop.f32.mrb[0].mxu0
        %v1094 = vadd.f32 %v1015, %v1093
        %v1095 = vpop.f32.mrb[0].mxu0
        %1096 = vdwg.mxu0
        %v1097 = vmax.f32 %v1094, 0.0
        %v1098 = vld [vmem:[%s2] sm:$0xf]
        %vm1099 = vcmask 31744
        %v1101 = vsel %vm1099, %v1097, 0
        %vm1103 = vcmask 1043456
        %v1105 = vsel %vm1103, %v1098, 0
        %1107 = vmatprep.subr.mxu0 0.0
        %v1108 = vand.u32 %v1105, 4294901760
        %1109 = vmatpush1.msra.mxu0 %v1108
        %1110 = vmatprep.subr.mxu0 0.0
        %1111 = vmatpush1.msra.mxu0 0.0
        %1112 = vmatprep.subr.mxu0 0.0
        %1113 = vmatpush1.msra.mxu0 0.0
        %1114 = vmatprep.subr.mxu0 0.0
        %1115 = vmatpush1.msra.mxu0 0.0
        %1116 = vmatprep.subr.mxu0 0.0
        %1117 = vmatpush1.msra.mxu0 0.0
        %1118 = vmatprep.subr.mxu0 0.0
        %1119 = vmatpush1.msra.mxu0 0.0
        %1120 = vmatprep.subr.mxu0 0.0
        %1121 = vmatpush1.msra.mxu0 0.0
        %1122 = vmatprep.subr.mxu0 0.0
        %1123 = vmatpush1.msra.mxu0 0.0
        %1124 = vmatprep.subr.mxu0 0.0
        %1125 = vmatpush1.msra.mxu0 0.0
        %1126 = vmatprep.subr.mxu0 0.0
        %1127 = vmatpush1.msra.mxu0 0.0
        %1128 = vmatprep.subr.mxu0 0.0
        %1129 = vmatpush1.msra.mxu0 0.0
        %1130 = vmatprep.subr.mxu0 0.0
        %1131 = vmatpush1.msra.mxu0 0.0
        %1132 = vmatprep.subr.mxu0 0.0
        %1133 = vmatpush1.msra.mxu0 0.0
        %1134 = vmatprep.subr.mxu0 0.0
        %1135 = vmatpush1.msra.mxu0 0.0
        %1136 = vmatprep.subr.mxu0 0.0
        %1137 = vmatpush1.msra.mxu0 0.0
        %1138 = vmatprep.subr.mxu0 0.0
        %1139 = vmatpush1.msra.mxu0 0.0
        %1140 = vmatprep.subr.mxu0 0.0
        %1141 = vmatpush1.msra.mxu0 0.0
        %1142 = vmatprep.subr.mxu0 0.0
        %1143 = vmatpush1.msra.mxu0 0.0
        %1144 = vmatprep.subr.mxu0 0.0
        %1145 = vmatpush1.msra.mxu0 0.0
        %1146 = vmatprep.subr.mxu0 0.0
        %1147 = vmatpush1.msra.mxu0 0.0
        %1148 = vmatprep.subr.mxu0 0.0
        %1149 = vmatpush1.msra.mxu0 0.0
        %1150 = vmatprep.subr.mxu0 0.0
        %1151 = vmatpush1.msra.mxu0 0.0
        %1152 = vmatprep.subr.mxu0 0.0
        %1153 = vmatpush1.msra.mxu0 0.0
        %1154 = vmatprep.subr.mxu0 0.0
        %1155 = vmatpush1.msra.mxu0 0.0
        %1156 = vmatprep.subr.mxu0 0.0
        %1157 = vmatpush1.msra.mxu0 0.0
        %1158 = vmatprep.subr.mxu0 0.0
        %1159 = vmatpush1.msra.mxu0 0.0
        %1160 = vmatprep.subr.mxu0 0.0
        %1161 = vmatpush1.msra.mxu0 0.0
        %1162 = vmatprep.subr.mxu0 0.0
        %1163 = vmatpush1.msra.mxu0 0.0
        %1164 = vmatprep.subr.mxu0 0.0
        %1165 = vmatpush1.msra.mxu0 0.0
        %1166 = vmatprep.subr.mxu0 0.0
        %1167 = vmatpush1.msra.mxu0 0.0
        %1168 = vmatprep.subr.mxu0 0.0
        %1169 = vmatpush1.msra.mxu0 0.0
        %1170 = vmatprep.subr.mxu0 0.0
        %1171 = vmatpush1.msra.mxu0 0.0
        %1172 = vmatprep.mubr.f32.mxu0 0.0
        %v1173 = vand.u32 %v1101, 4294901760
        %v1174 = vsub.f32 %v1101, %v1173
        %v1175 = vand.u32 %v1174, 4294901760
        %v1176 = vsub.f32 %v1174, %v1175
        %v1177 = vand.u32 %v1176, 4294901760
        %1178 = vmatmul.mubr.f32.gmra.mrb[0].mxu0 %v1177
        %v1179 = vpop.f32.mrb[0].mxu0
        %v1180 = vadd.f32 0.0, %v1179
        %v1181 = vpop.f32.mrb[0].mxu0
        %1182 = vdwg.mxu0
        %1183 = vmatprep.subr.mxu0 0.0
        %v1184 = vand.u32 %v1105, 4294901760
        %v1185 = vsub.f32 %v1105, %v1184
        %v1186 = vand.u32 %v1185, 4294901760
        %v1187 = vsub.f32 %v1185, %v1186
        %v1188 = vand.u32 %v1187, 4294901760
        %1189 = vmatpush1.msra.mxu0 %v1188
        %1190 = vmatprep.subr.mxu0 0.0
        %1191 = vmatpush1.msra.mxu0 0.0
        %1192 = vmatprep.subr.mxu0 0.0
        %1193 = vmatpush1.msra.mxu0 0.0
        %1194 = vmatprep.subr.mxu0 0.0
        %1195 = vmatpush1.msra.mxu0 0.0
        %1196 = vmatprep.subr.mxu0 0.0
        %1197 = vmatpush1.msra.mxu0 0.0
        %1198 = vmatprep.subr.mxu0 0.0
        %1199 = vmatpush1.msra.mxu0 0.0
        %1200 = vmatprep.subr.mxu0 0.0
        %1201 = vmatpush1.msra.mxu0 0.0
        %1202 = vmatprep.subr.mxu0 0.0
        %1203 = vmatpush1.msra.mxu0 0.0
        %1204 = vmatprep.subr.mxu0 0.0
        %1205 = vmatpush1.msra.mxu0 0.0
        %1206 = vmatprep.subr.mxu0 0.0
        %1207 = vmatpush1.msra.mxu0 0.0
        %1208 = vmatprep.subr.mxu0 0.0
        %1209 = vmatpush1.msra.mxu0 0.0
        %1210 = vmatprep.subr.mxu0 0.0
        %1211 = vmatpush1.msra.mxu0 0.0
        %1212 = vmatprep.subr.mxu0 0.0
        %1213 = vmatpush1.msra.mxu0 0.0
        %1214 = vmatprep.subr.mxu0 0.0
        %1215 = vmatpush1.msra.mxu0 0.0
        %1216 = vmatprep.subr.mxu0 0.0
        %1217 = vmatpush1.msra.mxu0 0.0
        %1218 = vmatprep.subr.mxu0 0.0
        %1219 = vmatpush1.msra.mxu0 0.0
        %1220 = vmatprep.subr.mxu0 0.0
        %1221 = vmatpush1.msra.mxu0 0.0
        %1222 = vmatprep.subr.mxu0 0.0
        %1223 = vmatpush1.msra.mxu0 0.0
        %1224 = vmatprep.subr.mxu0 0.0
        %1225 = vmatpush1.msra.mxu0 0.0
        %1226 = vmatprep.subr.mxu0 0.0
        %1227 = vmatpush1.msra.mxu0 0.0
        %1228 = vmatprep.subr.mxu0 0.0
        %1229 = vmatpush1.msra.mxu0 0.0
        %1230 = vmatprep.subr.mxu0 0.0
        %1231 = vmatpush1.msra.mxu0 0.0
        %1232 = vmatprep.subr.mxu0 0.0
        %1233 = vmatpush1.msra.mxu0 0.0
        %1234 = vmatprep.subr.mxu0 0.0
        %1235 = vmatpush1.msra.mxu0 0.0
        %1236 = vmatprep.subr.mxu0 0.0
        %1237 = vmatpush1.msra.mxu0 0.0
        %1238 = vmatprep.subr.mxu0 0.0
        %1239 = vmatpush1.msra.mxu0 0.0
        %1240 = vmatprep.subr.mxu0 0.0
        %1241 = vmatpush1.msra.mxu0 0.0
        %1242 = vmatprep.subr.mxu0 0.0
        %1243 = vmatpush1.msra.mxu0 0.0
        %1244 = vmatprep.subr.mxu0 0.0
        %1245 = vmatpush1.msra.mxu0 0.0
        %1246 = vmatprep.subr.mxu0 0.0
        %1247 = vmatpush1.msra.mxu0 0.0
        %1248 = vmatprep.subr.mxu0 0.0
        %1249 = vmatpush1.msra.mxu0 0.0
        %1250 = vmatprep.subr.mxu0 0.0
        %1251 = vmatpush1.msra.mxu0 0.0
        %1252 = vmatprep.mubr.f32.mxu0 0.0
        %v1253 = vand.u32 %v1101, 4294901760
        %1254 = vmatmul.mubr.f32.gmra.mrb[0].mxu0 %v1253
        %v1255 = vpop.f32.mrb[0].mxu0
        %v1256 = vadd.f32 %v1180, %v1255
        %v1257 = vpop.f32.mrb[0].mxu0
        %1258 = vdwg.mxu0
        %1259 = vmatprep.subr.mxu0 0.0
        %v1260 = vand.u32 %v1105, 4294901760
        %v1261 = vsub.f32 %v1105, %v1260
        %1262 = vmatpush1.msra.mxu0 %v1261
        %1263 = vmatprep.subr.mxu0 0.0
        %1264 = vmatpush1.msra.mxu0 0.0
        %1265 = vmatprep.subr.mxu0 0.0
        %1266 = vmatpush1.msra.mxu0 0.0
        %1267 = vmatprep.subr.mxu0 0.0
        %1268 = vmatpush1.msra.mxu0 0.0
        %1269 = vmatprep.subr.mxu0 0.0
        %1270 = vmatpush1.msra.mxu0 0.0
        %1271 = vmatprep.subr.mxu0 0.0
        %1272 = vmatpush1.msra.mxu0 0.0
        %1273 = vmatprep.subr.mxu0 0.0
        %1274 = vmatpush1.msra.mxu0 0.0
        %1275 = vmatprep.subr.mxu0 0.0
        %1276 = vmatpush1.msra.mxu0 0.0
        %1277 = vmatprep.subr.mxu0 0.0
        %1278 = vmatpush1.msra.mxu0 0.0
        %1279 = vmatprep.subr.mxu0 0.0
        %1280 = vmatpush1.msra.mxu0 0.0
        %1281 = vmatprep.subr.mxu0 0.0
        %1282 = vmatpush1.msra.mxu0 0.0
        %1283 = vmatprep.subr.mxu0 0.0
        %1284 = vmatpush1.msra.mxu0 0.0
        %1285 = vmatprep.subr.mxu0 0.0
        %1286 = vmatpush1.msra.mxu0 0.0
        %1287 = vmatprep.subr.mxu0 0.0
        %1288 = vmatpush1.msra.mxu0 0.0
        %1289 = vmatprep.subr.mxu0 0.0
        %1290 = vmatpush1.msra.mxu0 0.0
        %1291 = vmatprep.subr.mxu0 0.0
        %1292 = vmatpush1.msra.mxu0 0.0
        %1293 = vmatprep.subr.mxu0 0.0
        %1294 = vmatpush1.msra.mxu0 0.0
        %1295 = vmatprep.subr.mxu0 0.0
        %1296 = vmatpush1.msra.mxu0 0.0
        %1297 = vmatprep.subr.mxu0 0.0
        %1298 = vmatpush1.msra.mxu0 0.0
        %1299 = vmatprep.subr.mxu0 0.0
        %1300 = vmatpush1.msra.mxu0 0.0
        %1301 = vmatprep.subr.mxu0 0.0
        %1302 = vmatpush1.msra.mxu0 0.0
        %1303 = vmatprep.subr.mxu0 0.0
        %1304 = vmatpush1.msra.mxu0 0.0
        %1305 = vmatprep.subr.mxu0 0.0
        %1306 = vmatpush1.msra.mxu0 0.0
        %1307 = vmatprep.subr.mxu0 0.0
        %1308 = vmatpush1.msra.mxu0 0.0
        %1309 = vmatprep.subr.mxu0 0.0
        %1310 = vmatpush1.msra.mxu0 0.0
        %1311 = vmatprep.subr.mxu0 0.0
        %1312 = vmatpush1.msra.mxu0 0.0
        %1313 = vmatprep.subr.mxu0 0.0
        %1314 = vmatpush1.msra.mxu0 0.0
        %1315 = vmatprep.subr.mxu0 0.0
        %1316 = vmatpush1.msra.mxu0 0.0
        %1317 = vmatprep.subr.mxu0 0.0
        %1318 = vmatpush1.msra.mxu0 0.0
        %1319 = vmatprep.subr.mxu0 0.0
        %1320 = vmatpush1.msra.mxu0 0.0
        %1321 = vmatprep.subr.mxu0 0.0
        %1322 = vmatpush1.msra.mxu0 0.0
        %1323 = vmatprep.subr.mxu0 0.0
        %1324 = vmatpush1.msra.mxu0 0.0
        %1325 = vmatprep.mubr.f32.mxu0 0.0
        %v1326 = vand.u32 %v1101, 4294901760
        %v1327 = vsub.f32 %v1101, %v1326
        %1328 = vmatmul.mubr.f32.gmra.mrb[0].mxu0 %v1327
        %v1329 = vpop.f32.mrb[0].mxu0
        %v1330 = vadd.f32 %v1256, %v1329
        %v1331 = vpop.f32.mrb[0].mxu0
        %1332 = vdwg.mxu0
        %1333 = vmatprep.subr.mxu0 0.0
        %v1334 = vand.u32 %v1105, 4294901760
        %1335 = vmatpush1.msra.mxu0 %v1334
        %1336 = vmatprep.subr.mxu0 0.0
        %1337 = vmatpush1.msra.mxu0 0.0
        %1338 = vmatprep.subr.mxu0 0.0
        %1339 = vmatpush1.msra.mxu0 0.0
        %1340 = vmatprep.subr.mxu0 0.0
        %1341 = vmatpush1.msra.mxu0 0.0
        %1342 = vmatprep.subr.mxu0 0.0
        %1343 = vmatpush1.msra.mxu0 0.0
        %1344 = vmatprep.subr.mxu0 0.0
        %1345 = vmatpush1.msra.mxu0 0.0
        %1346 = vmatprep.subr.mxu0 0.0
        %1347 = vmatpush1.msra.mxu0 0.0
        %1348 = vmatprep.subr.mxu0 0.0
        %1349 = vmatpush1.msra.mxu0 0.0
        %1350 = vmatprep.subr.mxu0 0.0
        %1351 = vmatpush1.msra.mxu0 0.0
        %1352 = vmatprep.subr.mxu0 0.0
        %1353 = vmatpush1.msra.mxu0 0.0
        %1354 = vmatprep.subr.mxu0 0.0
        %1355 = vmatpush1.msra.mxu0 0.0
        %1356 = vmatprep.subr.mxu0 0.0
        %1357 = vmatpush1.msra.mxu0 0.0
        %1358 = vmatprep.subr.mxu0 0.0
        %1359 = vmatpush1.msra.mxu0 0.0
        %1360 = vmatprep.subr.mxu0 0.0
        %1361 = vmatpush1.msra.mxu0 0.0
        %1362 = vmatprep.subr.mxu0 0.0
        %1363 = vmatpush1.msra.mxu0 0.0
        %1364 = vmatprep.subr.mxu0 0.0
        %1365 = vmatpush1.msra.mxu0 0.0
        %1366 = vmatprep.subr.mxu0 0.0
        %1367 = vmatpush1.msra.mxu0 0.0
        %1368 = vmatprep.subr.mxu0 0.0
        %1369 = vmatpush1.msra.mxu0 0.0
        %1370 = vmatprep.subr.mxu0 0.0
        %1371 = vmatpush1.msra.mxu0 0.0
        %1372 = vmatprep.subr.mxu0 0.0
        %1373 = vmatpush1.msra.mxu0 0.0
        %1374 = vmatprep.subr.mxu0 0.0
        %1375 = vmatpush1.msra.mxu0 0.0
        %1376 = vmatprep.subr.mxu0 0.0
        %1377 = vmatpush1.msra.mxu0 0.0
        %1378 = vmatprep.subr.mxu0 0.0
        %1379 = vmatpush1.msra.mxu0 0.0
        %1380 = vmatprep.subr.mxu0 0.0
        %1381 = vmatpush1.msra.mxu0 0.0
        %1382 = vmatprep.subr.mxu0 0.0
        %1383 = vmatpush1.msra.mxu0 0.0
        %1384 = vmatprep.subr.mxu0 0.0
        %1385 = vmatpush1.msra.mxu0 0.0
        %1386 = vmatprep.subr.mxu0 0.0
        %1387 = vmatpush1.msra.mxu0 0.0
        %1388 = vmatprep.subr.mxu0 0.0
        %1389 = vmatpush1.msra.mxu0 0.0
        %1390 = vmatprep.subr.mxu0 0.0
        %1391 = vmatpush1.msra.mxu0 0.0
        %1392 = vmatprep.subr.mxu0 0.0
        %1393 = vmatpush1.msra.mxu0 0.0
        %1394 = vmatprep.subr.mxu0 0.0
        %1395 = vmatpush1.msra.mxu0 0.0
        %1396 = vmatprep.subr.mxu0 0.0
        %1397 = vmatpush1.msra.mxu0 0.0
        %1398 = vmatprep.mubr.f32.mxu0 0.0
        %v1399 = vand.u32 %v1101, 4294901760
        %v1400 = vsub.f32 %v1101, %v1399
        %v1401 = vand.u32 %v1400, 4294901760
        %1402 = vmatmul.mubr.f32.gmra.mrb[0].mxu0 %v1401
        %v1403 = vpop.f32.mrb[0].mxu0
        %v1404 = vadd.f32 %v1330, %v1403
        %v1405 = vpop.f32.mrb[0].mxu0
        %1406 = vdwg.mxu0
        %1407 = vmatprep.subr.mxu0 0.0
        %v1408 = vand.u32 %v1105, 4294901760
        %v1409 = vsub.f32 %v1105, %v1408
        %v1410 = vand.u32 %v1409, 4294901760
        %1411 = vmatpush1.msra.mxu0 %v1410
        %1412 = vmatprep.subr.mxu0 0.0
        %1413 = vmatpush1.msra.mxu0 0.0
        %1414 = vmatprep.subr.mxu0 0.0
        %1415 = vmatpush1.msra.mxu0 0.0
        %1416 = vmatprep.subr.mxu0 0.0
        %1417 = vmatpush1.msra.mxu0 0.0
        %1418 = vmatprep.subr.mxu0 0.0
        %1419 = vmatpush1.msra.mxu0 0.0
        %1420 = vmatprep.subr.mxu0 0.0
        %1421 = vmatpush1.msra.mxu0 0.0
        %1422 = vmatprep.subr.mxu0 0.0
        %1423 = vmatpush1.msra.mxu0 0.0
        %1424 = vmatprep.subr.mxu0 0.0
        %1425 = vmatpush1.msra.mxu0 0.0
        %1426 = vmatprep.subr.mxu0 0.0
        %1427 = vmatpush1.msra.mxu0 0.0
        %1428 = vmatprep.subr.mxu0 0.0
        %1429 = vmatpush1.msra.mxu0 0.0
        %1430 = vmatprep.subr.mxu0 0.0
        %1431 = vmatpush1.msra.mxu0 0.0
        %1432 = vmatprep.subr.mxu0 0.0
        %1433 = vmatpush1.msra.mxu0 0.0
        %1434 = vmatprep.subr.mxu0 0.0
        %1435 = vmatpush1.msra.mxu0 0.0
        %1436 = vmatprep.subr.mxu0 0.0
        %1437 = vmatpush1.msra.mxu0 0.0
        %1438 = vmatprep.subr.mxu0 0.0
        %1439 = vmatpush1.msra.mxu0 0.0
        %1440 = vmatprep.subr.mxu0 0.0
        %1441 = vmatpush1.msra.mxu0 0.0
        %1442 = vmatprep.subr.mxu0 0.0
        %1443 = vmatpush1.msra.mxu0 0.0
        %1444 = vmatprep.subr.mxu0 0.0
        %1445 = vmatpush1.msra.mxu0 0.0
        %1446 = vmatprep.subr.mxu0 0.0
        %1447 = vmatpush1.msra.mxu0 0.0
        %1448 = vmatprep.subr.mxu0 0.0
        %1449 = vmatpush1.msra.mxu0 0.0
        %1450 = vmatprep.subr.mxu0 0.0
        %1451 = vmatpush1.msra.mxu0 0.0
        %1452 = vmatprep.subr.mxu0 0.0
        %1453 = vmatpush1.msra.mxu0 0.0
        %1454 = vmatprep.subr.mxu0 0.0
        %1455 = vmatpush1.msra.mxu0 0.0
        %1456 = vmatprep.subr.mxu0 0.0
        %1457 = vmatpush1.msra.mxu0 0.0
        %1458 = vmatprep.subr.mxu0 0.0
        %1459 = vmatpush1.msra.mxu0 0.0
        %1460 = vmatprep.subr.mxu0 0.0
        %1461 = vmatpush1.msra.mxu0 0.0
        %1462 = vmatprep.subr.mxu0 0.0
        %1463 = vmatpush1.msra.mxu0 0.0
        %1464 = vmatprep.subr.mxu0 0.0
        %1465 = vmatpush1.msra.mxu0 0.0
        %1466 = vmatprep.subr.mxu0 0.0
        %1467 = vmatpush1.msra.mxu0 0.0
        %1468 = vmatprep.subr.mxu0 0.0
        %1469 = vmatpush1.msra.mxu0 0.0
        %1470 = vmatprep.subr.mxu0 0.0
        %1471 = vmatpush1.msra.mxu0 0.0
        %1472 = vmatprep.subr.mxu0 0.0
        %1473 = vmatpush1.msra.mxu0 0.0
        %1474 = vmatprep.mubr.f32.mxu0 0.0
        %v1475 = vand.u32 %v1101, 4294901760
        %1476 = vmatmul.mubr.f32.gmra.mrb[0].mxu0 %v1475
        %v1477 = vpop.f32.mrb[0].mxu0
        %v1478 = vadd.f32 %v1404, %v1477
        %v1479 = vpop.f32.mrb[0].mxu0
        %1480 = vdwg.mxu0
        %1481 = vmatprep.subr.mxu0 0.0
        %v1482 = vand.u32 %v1105, 4294901760
        %1483 = vmatpush1.msra.mxu0 %v1482
        %1484 = vmatprep.subr.mxu0 0.0
        %1485 = vmatpush1.msra.mxu0 0.0
        %1486 = vmatprep.subr.mxu0 0.0
        %1487 = vmatpush1.msra.mxu0 0.0
        %1488 = vmatprep.subr.mxu0 0.0
        %1489 = vmatpush1.msra.mxu0 0.0
        %1490 = vmatprep.subr.mxu0 0.0
        %1491 = vmatpush1.msra.mxu0 0.0
        %1492 = vmatprep.subr.mxu0 0.0
        %1493 = vmatpush1.msra.mxu0 0.0
        %1494 = vmatprep.subr.mxu0 0.0
        %1495 = vmatpush1.msra.mxu0 0.0
        %1496 = vmatprep.subr.mxu0 0.0
        %1497 = vmatpush1.msra.mxu0 0.0
        %1498 = vmatprep.subr.mxu0 0.0
        %1499 = vmatpush1.msra.mxu0 0.0
        %1500 = vmatprep.subr.mxu0 0.0
        %1501 = vmatpush1.msra.mxu0 0.0
        %1502 = vmatprep.subr.mxu0 0.0
        %1503 = vmatpush1.msra.mxu0 0.0
        %1504 = vmatprep.subr.mxu0 0.0
        %1505 = vmatpush1.msra.mxu0 0.0
        %1506 = vmatprep.subr.mxu0 0.0
        %1507 = vmatpush1.msra.mxu0 0.0
        %1508 = vmatprep.subr.mxu0 0.0
        %1509 = vmatpush1.msra.mxu0 0.0
        %1510 = vmatprep.subr.mxu0 0.0
        %1511 = vmatpush1.msra.mxu0 0.0
        %1512 = vmatprep.subr.mxu0 0.0
        %1513 = vmatpush1.msra.mxu0 0.0
        %1514 = vmatprep.subr.mxu0 0.0
        %1515 = vmatpush1.msra.mxu0 0.0
        %1516 = vmatprep.subr.mxu0 0.0
        %1517 = vmatpush1.msra.mxu0 0.0
        %1518 = vmatprep.subr.mxu0 0.0
        %1519 = vmatpush1.msra.mxu0 0.0
        %1520 = vmatprep.subr.mxu0 0.0
        %1521 = vmatpush1.msra.mxu0 0.0
        %1522 = vmatprep.subr.mxu0 0.0
        %1523 = vmatpush1.msra.mxu0 0.0
        %1524 = vmatprep.subr.mxu0 0.0
        %1525 = vmatpush1.msra.mxu0 0.0
        %1526 = vmatprep.subr.mxu0 0.0
        %1527 = vmatpush1.msra.mxu0 0.0
        %1528 = vmatprep.subr.mxu0 0.0
        %1529 = vmatpush1.msra.mxu0 0.0
        %1530 = vmatprep.subr.mxu0 0.0
        %1531 = vmatpush1.msra.mxu0 0.0
        %1532 = vmatprep.subr.mxu0 0.0
        %1533 = vmatpush1.msra.mxu0 0.0
        %1534 = vmatprep.subr.mxu0 0.0
        %1535 = vmatpush1.msra.mxu0 0.0
        %1536 = vmatprep.subr.mxu0 0.0
        %1537 = vmatpush1.msra.mxu0 0.0
        %1538 = vmatprep.subr.mxu0 0.0
        %1539 = vmatpush1.msra.mxu0 0.0
        %1540 = vmatprep.subr.mxu0 0.0
        %1541 = vmatpush1.msra.mxu0 0.0
        %1542 = vmatprep.subr.mxu0 0.0
        %1543 = vmatpush1.msra.mxu0 0.0
        %1544 = vmatprep.subr.mxu0 0.0
        %1545 = vmatpush1.msra.mxu0 0.0
        %1546 = vmatprep.mubr.f32.mxu0 0.0
        %v1547 = vand.u32 %v1101, 4294901760
        %1548 = vmatmul.mubr.f32.gmra.mrb[0].mxu0 %v1547
        %v1549 = vpop.f32.mrb[0].mxu0
        %v1550 = vadd.f32 %v1478, %v1549
        %v1551 = vpop.f32.mrb[0].mxu0
        %1552 = vdwg.mxu0
        %v1554 = vrot.slane %v1550, 2
        %v1556 = vadd.f32 %v1550, %v1554
        %v1557 = vand.u32 2147483647, %v1556
        %v1558 = vsub.f32 0.0, %v1557
        %v1559 = vmul.f32 %v1558, 1.442695
        %v1560 = vpow.pop %v1559
        %vm1561 = vcmp.ge.f32.partialorder %v1556, 0.0
        %v1562 = vadd.f32 %v1560, 1.0
        %v1563 = vrcp.pop %v1562
        %v1564 = vmul.f32 1.0, %v1563
        %v1565 = vmul.f32 %v1560, %v1563
        %v1566 = vsel %vm1561, %v1564, %v1565
        %v1567 = vlaneseq
        %v1568 = vshrl.u32 %v1567, 7
        %v1569 = vsub.s32 0, %v1568
        %v1570 = vrot.slane %v1566, %v1569
        %1572 = vbcast.lane.b32.xlu0 %v1570, 256
        %v1573 = vpop.permute.xlu0 %1572
        %s1575 = sor.u32 256, 8
        %1576 = vbcast.lane.b32.xlu0 %v1570, %s1575
        %v1577 = vpop.permute.xlu0 %1576
        %s1579 = sor.u32 256, 16
        %1580 = vbcast.lane.b32.xlu0 %v1570, %s1579
        %v1581 = vpop.permute.xlu0 %1580
        %s1583 = sor.u32 256, 24
        %1584 = vbcast.lane.b32.xlu0 %v1570, %s1583
        %v1585 = vpop.permute.xlu0 %1584
        %s1587 = sor.u32 256, 32
        %1588 = vbcast.lane.b32.xlu0 %v1570, %s1587
        %v1589 = vpop.permute.xlu0 %1588
        %s1591 = sor.u32 256, 40
        %1592 = vbcast.lane.b32.xlu0 %v1570, %s1591
        %v1593 = vpop.permute.xlu0 %1592
        %s1595 = sor.u32 256, 48
        %1596 = vbcast.lane.b32.xlu0 %v1570, %s1595
        %v1597 = vpop.permute.xlu0 %1596
        %s1599 = sor.u32 256, 56
        %1600 = vbcast.lane.b32.xlu0 %v1570, %s1599
        %v1601 = vpop.permute.xlu0 %1600
        %v1602 = vlaneseq
        %v1603 = vshrl.u32 %v1602, 7
        %v1604 = vsub.s32 1, %v1603
        %v1605 = vrot.slane %v1566, %v1604
        %1607 = vbcast.lane.b32.xlu0 %v1605, 256
        %v1608 = vpop.permute.xlu0 %1607
        %s1610 = sor.u32 256, 8
        %1611 = vbcast.lane.b32.xlu0 %v1605, %s1610
        %v1612 = vpop.permute.xlu0 %1611
        %s1614 = sor.u32 256, 16
        %1615 = vbcast.lane.b32.xlu0 %v1605, %s1614
        %v1616 = vpop.permute.xlu0 %1615
        %s1618 = sor.u32 256, 24
        %1619 = vbcast.lane.b32.xlu0 %v1605, %s1618
        %v1620 = vpop.permute.xlu0 %1619
        %s1622 = sor.u32 256, 32
        %1623 = vbcast.lane.b32.xlu0 %v1605, %s1622
        %v1624 = vpop.permute.xlu0 %1623
        %s1626 = sor.u32 256, 40
        %1627 = vbcast.lane.b32.xlu0 %v1605, %s1626
        %v1628 = vpop.permute.xlu0 %1627
        %s1630 = sor.u32 256, 48
        %1631 = vbcast.lane.b32.xlu0 %v1605, %s1630
        %v1632 = vpop.permute.xlu0 %1631
        %s1634 = sor.u32 256, 56
        %1635 = vbcast.lane.b32.xlu0 %v1605, %s1634
        %v1636 = vpop.permute.xlu0 %1635
        %v1637 = vmul.f32 %v192, %v1573
        %v1638 = vmul.f32 %v193, %v1573
        %v1639 = vmul.f32 %v194, %v1577
        %v1640 = vmul.f32 %v195, %v1577
        %v1641 = vmul.f32 %v196, %v1581
        %v1642 = vmul.f32 %v197, %v1581
        %v1643 = vmul.f32 %v198, %v1585
        %v1644 = vmul.f32 %v199, %v1585
        %v1645 = vmul.f32 %v200, %v1589
        %v1646 = vmul.f32 %v201, %v1589
        %v1647 = vmul.f32 %v202, %v1593
        %v1648 = vmul.f32 %v203, %v1593
        %v1649 = vmul.f32 %v204, %v1597
        %v1650 = vmul.f32 %v205, %v1597
        %v1651 = vmul.f32 %v206, %v1601
        %v1652 = vmul.f32 %v207, %v1601
        %v1653 = vmul.f32 %v208, %v1608
        %v1654 = vmul.f32 %v209, %v1608
        %v1655 = vmul.f32 %v210, %v1612
        %v1656 = vmul.f32 %v211, %v1612
        %v1657 = vmul.f32 %v212, %v1616
        %v1658 = vmul.f32 %v213, %v1616
        %v1659 = vmul.f32 %v214, %v1620
        %v1660 = vmul.f32 %v215, %v1620
        %v1661 = vmul.f32 %v216, %v1624
        %v1662 = vmul.f32 %v217, %v1624
        %v1663 = vmul.f32 %v218, %v1628
        %v1664 = vmul.f32 %v219, %v1628
        %v1665 = vmul.f32 %v220, %v1632
        %v1666 = vmul.f32 %v221, %v1632
        %v1667 = vmul.f32 %v222, %v1636
        %v1668 = vmul.f32 %v223, %v1636
        %1669 = vst [vmem:[%s189] sm:$0xff] %v1637
        %1670 = vst [vmem:[%s189 + $0x8] sm:$0xff] %v1638
        %1671 = vst [vmem:[%s189 + $0x10] sm:$0xff] %v1639
        %1672 = vst [vmem:[%s189 + $0x18] sm:$0xff] %v1640
        %1673 = vst [vmem:[%s189 + $0x20] sm:$0xff] %v1641
        %1674 = vst [vmem:[%s189 + $0x28] sm:$0xff] %v1642
        %1675 = vst [vmem:[%s189 + $0x30] sm:$0xff] %v1643
        %1676 = vst [vmem:[%s189 + $0x38] sm:$0xff] %v1644
        %1677 = vst [vmem:[%s189 + $0x40] sm:$0xff] %v1645
        %1678 = vst [vmem:[%s189 + $0x48] sm:$0xff] %v1646
        %1679 = vst [vmem:[%s189 + $0x50] sm:$0xff] %v1647
        %1680 = vst [vmem:[%s189 + $0x58] sm:$0xff] %v1648
        %1681 = vst [vmem:[%s189 + $0x60] sm:$0xff] %v1649
        %1682 = vst [vmem:[%s189 + $0x68] sm:$0xff] %v1650
        %1683 = vst [vmem:[%s189 + $0x70] sm:$0xff] %v1651
        %1684 = vst [vmem:[%s189 + $0x78] sm:$0xff] %v1652
        %1685 = vst [vmem:[%s189 + $0x80] sm:$0xff] %v1653
        %1686 = vst [vmem:[%s189 + $0x88] sm:$0xff] %v1654
        %1687 = vst [vmem:[%s189 + $0x90] sm:$0xff] %v1655
        %1688 = vst [vmem:[%s189 + $0x98] sm:$0xff] %v1656
        %1689 = vst [vmem:[%s189 + $0xa0] sm:$0xff] %v1657
        %1690 = vst [vmem:[%s189 + $0xa8] sm:$0xff] %v1658
        %1691 = vst [vmem:[%s189 + $0xb0] sm:$0xff] %v1659
        %1692 = vst [vmem:[%s189 + $0xb8] sm:$0xff] %v1660
        %1693 = vst [vmem:[%s189 + $0xc0] sm:$0xff] %v1661
        %1694 = vst [vmem:[%s189 + $0xc8] sm:$0xff] %v1662
        %1695 = vst [vmem:[%s189 + $0xd0] sm:$0xff] %v1663
        %1696 = vst [vmem:[%s189 + $0xd8] sm:$0xff] %v1664
        %1697 = vst [vmem:[%s189 + $0xe0] sm:$0xff] %v1665
        %1698 = vst [vmem:[%s189 + $0xe8] sm:$0xff] %v1666
        %1699 = vst [vmem:[%s189 + $0xf0] sm:$0xff] %v1667
        %1700 = vst [vmem:[%s189 + $0xf8] sm:$0xff] %v1668
        %s1701 = sand.u32 %s96, 1
        %s1702 = scalar_lea.sflag [#allocation4], %s1701
        %s1703 = sand.u32 %s96, 1
        %s1704 = smul.addr %s1703, 256
        %s1705 = scalar_lea.vmem [#allocation5], %s1704
        // Predicated region
        $region37: #{tpu_custom_call.1} parent=31 // pred_check
          %p1706 = pneg %p106
        $region38: #{tpu_custom_call.1} parent=31 // pred_check_branch
          %1708 = sbr.rel (%p1706) target = $region40
        $region39: #{tpu_custom_call.1} parent=31 // pred_region
          %s1709 = smul.u32 2, %s20
          %s1711 = ssub.s32 4096, 4096
          %1712 = vsyncadd %s1702, %s1711
          %s1713 = smul.addr %s1709, 16
          %s1714 = smul.addr %s1713, 128
          %s1715 = scalar_lea.hbm %s3, %s1714
          %s1716 = sshll.u32 %s1705, 4
          %s1717 = int_to_ptr.vmem [resolvable:$true] %s1716
          %1722 = dma.vmem_to_hbm [thread:$0]  %s1717, 4096, %s1715, %s1702, 256, 256, 16
        $region40: #{tpu_custom_call.1} parent=31 // pred_fallthru
          _
      $region32: #{tpu_custom_call.1} parent=5 // pred_fallthru
        _
      %p1723 = scmp.le.s32.totalorder 2, %s15
      // Predicated region
      $region41: #{tpu_custom_call.1} parent=5 // pred_check
        %p1724 = pneg %p1723
      $region42: #{tpu_custom_call.1} parent=5 // pred_check_branch
        %1726 = sbr.rel (%p1724) target = $region44
      $region43: #{tpu_custom_call.1} parent=5 // pred_region
        %s1727 = ssub.s32 %s15, 2
        // Predicated region
        $region45: #{tpu_custom_call.1} parent=43 // pred_check
          %p1728 = pneg %p112
        $region46: #{tpu_custom_call.1} parent=43 // pred_check_branch
          %1730 = sbr.rel (%p1728) target = $region48
        $region47: #{tpu_custom_call.1} parent=43 // pred_region
          %s1731 = sand.u32 %s97, 1
          %s1732 = scalar_lea.sflag [#allocation4], %s1731
          %s1733 = sand.u32 %s97, 1
          %s1734 = smul.addr %s1733, 256
          %s1735 = scalar_lea.vmem [#allocation5], %s1734
          %1736 = dma.done %s1732, 4096
        $region48: #{tpu_custom_call.1} parent=43 // pred_fallthru
          _
      $region44: #{tpu_custom_call.1} parent=5 // pred_fallthru
        _
    $region6: #{tpu_custom_call.1} parent=1 // loop_footer
      %s19 = sadd.s32 1, %s15
    $region7: #{tpu_custom_call.1} parent=1 // loop_footer_branch
      %14 = sbr.rel target = $region3
    $region8: #{tpu_custom_call.1} parent=1 // loop_exit
      _
    %1737 = vsyncpa [#allocation3], 1
    %s1738 = scalar_lea.sflag [#allocation3], 1
    %1739 = vsyncpa %s1738, 1
    %1740 = vsyncpa [#allocation4], 1
    %s1741 = scalar_lea.sflag [#allocation4], 1
    %1742 = vsyncpa %s1741, 1

</llo_original>
